<compile_context>
chip_gen: v6e
topology: v6e:2x2x1
jax: 0.10.0
libtpu: 0.0.40
codegen_flags: <defaults>
</compile_context>

<pallas_src>
import math
import functools

import jax
import jax.numpy as jnp
from jax.experimental import pallas as pl
from jax.experimental.pallas import tpu as pltpu

HIDDEN = 768          # hard-coded in the PyTorch module
INPUT_SIZE = 768      # input_size defaults to hidden_size
LN_EPS = 1e-12
_INV_SQRT2 = 1.0 / math.sqrt(2.0)


def _round_up(n, m):
    return ((n + m - 1) // m) * m


def _head_transform_kernel(x_ref, w_ref, b_ref, g_ref, beta_ref, o_ref):
    # x_ref: (tm, K) in the caller's dtype; w_ref: (K, N) bf16 (resident);
    # b/g/beta: (1, N) f32; o_ref: (tm, N) out dtype.
    a = x_ref[...].astype(jnp.bfloat16)            # in-kernel cast (no wrapper pass)
    h = jnp.dot(a, w_ref[...], preferred_element_type=jnp.float32)
    h = h + b_ref[...]

    # Exact (erf-based) GELU, evaluated in bf16: halves the VALU polynomial
    # cost on v6e/v7x (bf16 VPU); compiler upcasts on v5e.  f32 everywhere else.
    hb = h.astype(jnp.bfloat16)
    gelu_b = hb * 0.5 * (1.0 + jax.lax.erf(hb * _INV_SQRT2))
    h = gelu_b.astype(jnp.float32)

    # BertLayerNorm over the hidden axis: two-pass biased variance in f32,
    # eps inside the sqrt; rsqrt goes to the EUP slot (no VPU divide).
    u = jnp.mean(h, axis=-1, keepdims=True)
    d = h - u
    s = jnp.mean(d * d, axis=-1, keepdims=True)
    hn = d * jax.lax.rsqrt(s + LN_EPS)
    o_ref[...] = (g_ref[...] * hn + beta_ref[...]).astype(o_ref.dtype)


def prepare_params(w, b, gamma, beta):
    """One-time conversion of nn.Linear / LayerNorm params to kernel layout.

    w is (out_features, in_features) as in torch nn.Linear.  Call this once at
    init so the per-call path carries no weight cast / reshape HBM traffic.
    """
    w_t_bf16 = jnp.asarray(w).T.astype(jnp.bfloat16)          # (K, N)
    b2 = jnp.asarray(b, jnp.float32).reshape(1, -1)
    g2 = jnp.asarray(gamma, jnp.float32).reshape(1, -1)
    be2 = jnp.asarray(beta, jnp.float32).reshape(1, -1)
    return w_t_bf16, b2, g2, be2


@functools.partial(jax.jit, static_argnames=("tm", "out_dtype"))
def bert_prediction_head_transform(x, w_t_bf16, b2, g2, be2, *, tm=512,
                                   out_dtype=None):
    """x: (batch, seq, K) float; params pre-converted via prepare_params()."""
    batch, seq, K = x.shape
    N = w_t_bf16.shape[1]
    M = batch * seq
    out_dtype = x.dtype if out_dtype is None else out_dtype

    x2 = x.reshape(M, K)                 # metadata-only: no cast, no pad

    # Row tile: as large as requested, 8-aligned, never larger than needed.
    tm_eff = min(tm, _round_up(M, 8))
    num_steps = pl.cdiv(M, tm_eff)
    # v7x has 2 TensorCores: ensure >= 2 grid steps on the "parallel" axis
    # whenever each half still keeps >= 256 rows.
    if num_steps == 1 and M >= 512:
        tm_eff = _round_up(pl.cdiv(M, 2), 8)
        num_steps = pl.cdiv(M, tm_eff)

    out = pl.pallas_call(
        _head_transform_kernel,
        out_shape=jax.ShapeDtypeStruct((M, N), out_dtype),
        grid_spec=pltpu.PrefetchScalarGridSpec(
            num_scalar_prefetch=0,
            grid=(num_steps,),
            in_specs=[
                pl.BlockSpec((tm_eff, K), lambda i: (i, 0)),  # x rows (pipelined; ragged last block masked)
                pl.BlockSpec((K, N), lambda i: (0, 0)),       # weight (resident bf16)
                pl.BlockSpec((1, N), lambda i: (0, 0)),       # bias
                pl.BlockSpec((1, N), lambda i: (0, 0)),       # gamma
                pl.BlockSpec((1, N), lambda i: (0, 0)),       # beta
            ],
            out_specs=pl.BlockSpec((tm_eff, N), lambda i: (i, 0)),
        ),
        compiler_params=pltpu.CompilerParams(
            dimension_semantics=("parallel",),
            vmem_limit_bytes=32 * 1024 * 1024,
        ),
    )(x2, w_t_bf16, b2, g2, be2)

    return out.reshape(batch, seq, N)


def _reference(x, w_t, b, gamma, beta):
    h = jnp.einsum("bsk,kn->bsn", x, w_t) + b
    h = h * 0.5 * (1.0 + jax.lax.erf(h / jnp.sqrt(2.0)))
    u = jnp.mean(h, axis=-1, keepdims=True)
    s = jnp.mean((h - u) ** 2, axis=-1, keepdims=True)
    return gamma * (h - u) / jnp.sqrt(s + LN_EPS) + beta


if __name__ == "__main__":
    key = jax.random.PRNGKey(0)
    kx, kw, kb, kg, kbe = jax.random.split(key, 5)

    batch, seq = 2, 8
    x = jax.random.normal(kx, (batch, seq, INPUT_SIZE), dtype=jnp.float32)

    # Deterministic synthetic parameters (nn.Linear-ish scale).
    bound = 1.0 / math.sqrt(INPUT_SIZE)
    w = jax.random.uniform(kw, (HIDDEN, INPUT_SIZE), jnp.float32, -bound, bound)  # (out, in)
    b = jax.random.uniform(kb, (HIDDEN,), jnp.float32, -bound, bound)
    gamma = jnp.ones((HIDDEN,), jnp.float32) + 0.01 * jax.random.normal(kg, (HIDDEN,))
    beta = 0.01 * jax.random.normal(kbe, (HIDDEN,))

    # One-time parameter preparation (outside the jitted hot path).
    params = prepare_params(w, b, gamma, beta)
    params = jax.block_until_ready(params)
    w_t_bf16, b2, g2, be2 = params

    out = bert_prediction_head_transform(x, w_t_bf16, b2, g2, be2)
    out = jax.block_until_ready(out)

    ref = _reference(x, w.T, b, gamma, beta)
    assert out.shape == (batch, seq, HIDDEN)
    # bf16 matmul operands + bf16 GELU (f32 accumulation / LayerNorm stats):
    # tolerance loosened vs the pure-f32 reference.
    max_err = float(jnp.max(jnp.abs(out - ref)))
    assert jnp.allclose(out, ref, atol=2e-2, rtol=3e-2), max_err
    print("KERNEL_OK")
</pallas_src>

<mosaic_0001>
module attributes {stable_mosaic.version = 11 : i64} {
  func.func @_head_transform_kernel(%arg0: i32, %arg1: memref<16x768xf32, #tpu.memory_space<vmem>>, %arg2: memref<768x768xbf16, #tpu.memory_space<vmem>>, %arg3: memref<1x768xf32, #tpu.memory_space<vmem>>, %arg4: memref<1x768xf32, #tpu.memory_space<vmem>>, %arg5: memref<1x768xf32, #tpu.memory_space<vmem>>, %arg6: memref<16x768xf32, #tpu.memory_space<vmem>>) attributes {dimension_semantics = [#tpu.dimension_semantics<parallel>], iteration_bounds = array<i64: 1>, scalar_prefetch = 0 : i64, scratch_operands = 0 : i64, tpu.core_type = #tpu.core_type<tc>, window_params = [{transform_indices = @transform_0, window_bounds = array<i64: 16, 768>}, {pipeline_mode = #tpu.pipeline_mode<synchronous>, transform_indices = @transform_1, window_bounds = array<i64: 768, 768>}, {pipeline_mode = #tpu.pipeline_mode<synchronous>, transform_indices = @transform_2, window_bounds = array<i64: 1, 768>}, {pipeline_mode = #tpu.pipeline_mode<synchronous>, transform_indices = @transform_3, window_bounds = array<i64: 1, 768>}, {pipeline_mode = #tpu.pipeline_mode<synchronous>, transform_indices = @transform_4, window_bounds = array<i64: 1, 768>}, {transform_indices = @transform_5, window_bounds = array<i64: 16, 768>}]} {
    %c0 = arith.constant 0 : index
    %c0_0 = arith.constant 0 : index
    %0 = vector.load %arg1[%c0, %c0_0] : memref<16x768xf32, #tpu.memory_space<vmem>>, vector<16x768xf32>
    %1 = arith.truncf %0 : vector<16x768xf32> to vector<16x768xbf16>
    %c0_1 = arith.constant 0 : index
    %c0_2 = arith.constant 0 : index
    %2 = vector.load %arg2[%c0_1, %c0_2] : memref<768x768xbf16, #tpu.memory_space<vmem>>, vector<768x768xbf16>
    %cst = arith.constant dense<0.000000e+00> : vector<16x768xf32>
    %3 = tpu.matmul %1, %2, %cst {dimension_numbers = #tpu.dot_dimension_numbers<[1], [0], [0], [1], [0, 0, 1, 1], [], []>} : vector<16x768xbf16>, vector<768x768xbf16>, vector<16x768xf32> -> vector<16x768xf32>
    %c0_3 = arith.constant 0 : index
    %c0_4 = arith.constant 0 : index
    %4 = vector.load %arg3[%c0_3, %c0_4] : memref<1x768xf32, #tpu.memory_space<vmem>>, vector<1x768xf32>
    %5 = vector.broadcast %4 : vector<1x768xf32> to vector<16x768xf32>
    %6 = arith.addf %3, %5 : vector<16x768xf32>
    %7 = arith.truncf %6 : vector<16x768xf32> to vector<16x768xbf16>
    %cst_5 = arith.constant 5.000000e-01 : bf16
    %8 = vector.broadcast %cst_5 : bf16 to vector<16x768xbf16>
    %9 = arith.mulf %7, %8 : vector<16x768xbf16>
    %cst_6 = arith.constant 7.070310e-01 : bf16
    %10 = vector.broadcast %cst_6 : bf16 to vector<16x768xbf16>
    %11 = arith.mulf %7, %10 : vector<16x768xbf16>
    %12 = math.erf %11 : vector<16x768xbf16>
    %cst_7 = arith.constant 1.000000e+00 : bf16
    %13 = vector.broadcast %cst_7 : bf16 to vector<16x768xbf16>
    %14 = arith.addf %13, %12 : vector<16x768xbf16>
    %15 = arith.mulf %9, %14 : vector<16x768xbf16>
    %16 = arith.extf %15 : vector<16x768xbf16> to vector<16x768xf32>
    %cst_8 = arith.constant dense<0.000000e+00> : vector<16xf32>
    %17 = vector.multi_reduction <add>, %16, %cst_8 [1] : vector<16x768xf32> to vector<16xf32>
    %18 = vector.shape_cast %17 : vector<16xf32> to vector<16x1xf32>
    %cst_9 = arith.constant 7.680000e+02 : f32
    %19 = vector.broadcast %cst_9 : f32 to vector<16x1xf32>
    %20 = arith.divf %18, %19 : vector<16x1xf32>
    %21 = vector.broadcast %20 : vector<16x1xf32> to vector<16x768xf32>
    %22 = arith.subf %16, %21 : vector<16x768xf32>
    %23 = arith.mulf %22, %22 : vector<16x768xf32>
    %cst_10 = arith.constant dense<0.000000e+00> : vector<16xf32>
    %24 = vector.multi_reduction <add>, %23, %cst_10 [1] : vector<16x768xf32> to vector<16xf32>
    %25 = vector.shape_cast %24 : vector<16xf32> to vector<16x1xf32>
    %cst_11 = arith.constant 7.680000e+02 : f32
    %26 = vector.broadcast %cst_11 : f32 to vector<16x1xf32>
    %27 = arith.divf %25, %26 : vector<16x1xf32>
    %cst_12 = arith.constant 9.99999996E-13 : f32
    %28 = vector.broadcast %cst_12 : f32 to vector<16x1xf32>
    %29 = arith.addf %27, %28 : vector<16x1xf32>
    %30 = math.rsqrt %29 : vector<16x1xf32>
    %31 = vector.broadcast %30 : vector<16x1xf32> to vector<16x768xf32>
    %32 = arith.mulf %22, %31 : vector<16x768xf32>
    %c0_13 = arith.constant 0 : index
    %c0_14 = arith.constant 0 : index
    %33 = vector.load %arg4[%c0_13, %c0_14] : memref<1x768xf32, #tpu.memory_space<vmem>>, vector<1x768xf32>
    %34 = vector.broadcast %33 : vector<1x768xf32> to vector<16x768xf32>
    %35 = arith.mulf %34, %32 : vector<16x768xf32>
    %c0_15 = arith.constant 0 : index
    %c0_16 = arith.constant 0 : index
    %36 = vector.load %arg5[%c0_15, %c0_16] : memref<1x768xf32, #tpu.memory_space<vmem>>, vector<1x768xf32>
    %37 = vector.broadcast %36 : vector<1x768xf32> to vector<16x768xf32>
    %38 = arith.addf %35, %37 : vector<16x768xf32>
    %c0_17 = arith.constant 0 : index
    %c0_18 = arith.constant 0 : index
    %39 = vector.load %arg6[%c0_17, %c0_18] : memref<16x768xf32, #tpu.memory_space<vmem>>, vector<16x768xf32>
    tpu.vector_store %arg6[%c0_17, %c0_18], %38 {strides = array<i32>} : memref<16x768xf32, #tpu.memory_space<vmem>>, vector<16x768xf32>,
    return
  }
  func.func @transform_0(%arg0: i32) -> (i32, i32) {
    %c0_i32 = arith.constant 0 : i32
    %c0_i32_0 = arith.constant 0 : i32
    return %arg0, %c0_i32 : i32, i32
  }
  func.func @transform_1(%arg0: i32) -> (i32, i32) {
    %c0_i32 = arith.constant 0 : i32
    %c0_i32_0 = arith.constant 0 : i32
    %c0_i32_1 = arith.constant 0 : i32
    return %c0_i32, %c0_i32_0 : i32, i32
  }
  func.func @transform_2(%arg0: i32) -> (i32, i32) {
    %c0_i32 = arith.constant 0 : i32
    %c0_i32_0 = arith.constant 0 : i32
    %c0_i32_1 = arith.constant 0 : i32
    return %c0_i32, %c0_i32_0 : i32, i32
  }
  func.func @transform_3(%arg0: i32) -> (i32, i32) {
    %c0_i32 = arith.constant 0 : i32
    %c0_i32_0 = arith.constant 0 : i32
    %c0_i32_1 = arith.constant 0 : i32
    return %c0_i32, %c0_i32_0 : i32, i32
  }
  func.func @transform_4(%arg0: i32) -> (i32, i32) {
    %c0_i32 = arith.constant 0 : i32
    %c0_i32_0 = arith.constant 0 : i32
    %c0_i32_1 = arith.constant 0 : i32
    return %c0_i32, %c0_i32_0 : i32, i32
  }
  func.func @transform_5(%arg0: i32) -> (i32, i32) {
    %c0_i32 = arith.constant 0 : i32
    %c0_i32_0 = arith.constant 0 : i32
    return %arg0, %c0_i32 : i32, i32
  }
}

</mosaic_0001>

<llo_original>
// kernel: bert_prediction_head_transform.1
$region0: #{bert_prediction_head_transform.1}
  #allocation0 [shape = 'u32[]', space=smem, size = 0x4, offset = 0x4, fixed_abs, tag = 'smem constant byte address 0x4 - core index']
  #allocation1 [shape = 'u32[144,128]{1,0:T(1,128)}', space=vmem, size = 0x12000, scoped, tag = 'internal scratch']
  %s0 = inlined_call_operand.hbm [shape: f32[16,768], index: 0, kind: input, shape index: {}]
  %s1 = inlined_call_operand.hbm [shape: bf16[768,768], index: 1, kind: input, shape index: {}]
  %s2 = inlined_call_operand.hbm [shape: f32[1,768], index: 2, kind: input, shape index: {}]
  %s3 = inlined_call_operand.hbm [shape: f32[1,768], index: 3, kind: input, shape index: {}]
  %s4 = inlined_call_operand.hbm [shape: f32[1,768], index: 4, kind: input, shape index: {}]
  %s5 = inlined_call_operand.hbm [shape: f32[16,768], index: 5, kind: output, shape index: {}]
  %s6 = sld [smem:[#allocation0]]
  $region50: #{bert_prediction_head_transform.1} parent=0
    _
  %s8 = ssub.s32 1, %s6
  %s9 = scalar_select 0, %s8, %s6
  $region1: #{bert_prediction_head_transform.1} parent=0
    #allocation2 [shape = 'u8[49152]{0}', space=vmem, size = 0xc000, scoped, tag = 'input window, operand 0, single buffered']
    #allocation3 [shape = 's32[1]{0}', space=sflag, size = 0x4, scoped, tag = 'scoped memory for bert_prediction_head_transform.1']
    #allocation4 [shape = 's32[1]{0}', space=sflag, size = 0x4, scoped, tag = 'scoped memory for bert_prediction_head_transform.1']
    #allocation5 [shape = 'u8[1179648]{0}', space=vmem, size = 0x120000, scoped, tag = 'input window, operand 1, single buffered']
    #allocation6 [shape = 's32[1]{0}', space=sflag, size = 0x4, scoped, tag = 'scoped memory for bert_prediction_head_transform.1']
    #allocation7 [shape = 'u8[3072]{0}', space=vmem, size = 0xc00, scoped, tag = 'input window, operand 2, single buffered']
    #allocation8 [shape = 'u8[3072]{0}', space=vmem, size = 0xc00, scoped, tag = 'input window, operand 3, single buffered']
    #allocation9 [shape = 's32[1]{0}', space=sflag, size = 0x4, scoped, tag = 'scoped memory for bert_prediction_head_transform.1']
    #allocation10 [shape = 'u8[3072]{0}', space=vmem, size = 0xc00, scoped, tag = 'input window, operand 4, single buffered']
    #allocation11 [shape = 'u8[49152]{0}', space=vmem, size = 0xc000, scoped, tag = 'output window, operand 0, single buffered']
    %10 = vsyncpa [#allocation3], 0
    %11 = vsyncpa [#allocation6], 0
    %12 = vsyncpa [#allocation9], 0
    %13 = vsyncpa [#allocation4], 0
    // Predicated region
    $region2: #{bert_prediction_head_transform.1} parent=1 // pred_check
      _
    $region3: #{bert_prediction_head_transform.1} parent=1 // pred_check_branch
      %15 = sbr.rel (0) target = $region5
    $region4: #{bert_prediction_head_transform.1} parent=1 // pred_region
      %s17 = ssub.s32 1536, 1536
      %18 = vsyncadd [#allocation3], %s17
      %s19 = sshll.u32 [#allocation2], 4
      %s20 = int_to_ptr.vmem [resolvable:$true] %s19
      %25 = dma.hbm_to_vmem [thread:$0]  %s0, 1536, %s20, [#allocation3], 768, 768, 48
    $region5: #{bert_prediction_head_transform.1} parent=1 // pred_fallthru
      _
    // Predicated region
    $region6: #{bert_prediction_head_transform.1} parent=1 // pred_check
      _
    $region7: #{bert_prediction_head_transform.1} parent=1 // pred_check_branch
      %27 = sbr.rel (0) target = $region9
    $region8: #{bert_prediction_head_transform.1} parent=1 // pred_region
      %s29 = ssub.s32 36864, 36864
      %30 = vsyncadd [#allocation6], %s29
      %s31 = sshll.u32 [#allocation5], 4
      %s32 = int_to_ptr.vmem [resolvable:$true] %s31
      %37 = dma.hbm_to_vmem [thread:$0]  %s1, 36864, %s32, [#allocation6], 384, 384, 24
    $region9: #{bert_prediction_head_transform.1} parent=1 // pred_fallthru
      _
    // Predicated region
    $region10: #{bert_prediction_head_transform.1} parent=1 // pred_check
      _
    $region11: #{bert_prediction_head_transform.1} parent=1 // pred_check_branch
      %39 = sbr.rel (0) target = $region13
    $region12: #{bert_prediction_head_transform.1} parent=1 // pred_region
      %s41 = ssub.s32 96, 96
      %42 = vsyncadd [#allocation6], %s41
      %s44 = sshll.u32 [#allocation7], 4
      %s45 = int_to_ptr.vmem [resolvable:$true] %s44
      %47 = dma.hbm_to_vmem [thread:$0]  %s2, 96, %s45, [#allocation6]
    $region13: #{bert_prediction_head_transform.1} parent=1 // pred_fallthru
      _
    // Predicated region
    $region14: #{bert_prediction_head_transform.1} parent=1 // pred_check
      _
    $region15: #{bert_prediction_head_transform.1} parent=1 // pred_check_branch
      %49 = sbr.rel (0) target = $region17
    $region16: #{bert_prediction_head_transform.1} parent=1 // pred_region
      %s51 = ssub.s32 96, 96
      %52 = vsyncadd [#allocation9], %s51
      %s54 = sshll.u32 [#allocation8], 4
      %s55 = int_to_ptr.vmem [resolvable:$true] %s54
      %57 = dma.hbm_to_vmem [thread:$0]  %s3, 96, %s55, [#allocation9]
    $region17: #{bert_prediction_head_transform.1} parent=1 // pred_fallthru
      _
    // Predicated region
    $region18: #{bert_prediction_head_transform.1} parent=1 // pred_check
      _
    $region19: #{bert_prediction_head_transform.1} parent=1 // pred_check_branch
      %59 = sbr.rel (0) target = $region21
    $region20: #{bert_prediction_head_transform.1} parent=1 // pred_region
      %s61 = ssub.s32 96, 96
      %62 = vsyncadd [#allocation9], %s61
      %s64 = sshll.u32 [#allocation10], 4
      %s65 = int_to_ptr.vmem [resolvable:$true] %s64
      %67 = dma.hbm_to_vmem [thread:$0]  %s4, 96, %s65, [#allocation9]
    $region21: #{bert_prediction_head_transform.1} parent=1 // pred_fallthru
      _
    // Predicated region
    $region22: #{bert_prediction_head_transform.1} parent=1 // pred_check
      _
    $region23: #{bert_prediction_head_transform.1} parent=1 // pred_check_branch
      %69 = sbr.rel (0) target = $region25
    $region24: #{bert_prediction_head_transform.1} parent=1 // pred_region
      %70 = dma.done [#allocation3], 1536
    $region25: #{bert_prediction_head_transform.1} parent=1 // pred_fallthru
      _
    // Predicated region
    $region26: #{bert_prediction_head_transform.1} parent=1 // pred_check
      _
    $region27: #{bert_prediction_head_transform.1} parent=1 // pred_check_branch
      %72 = sbr.rel (0) target = $region29
    $region28: #{bert_prediction_head_transform.1} parent=1 // pred_region
      %73 = dma.done [#allocation6], 36864
    $region29: #{bert_prediction_head_transform.1} parent=1 // pred_fallthru
      _
    // Predicated region
    $region30: #{bert_prediction_head_transform.1} parent=1 // pred_check
      _
    $region31: #{bert_prediction_head_transform.1} parent=1 // pred_check_branch
      %75 = sbr.rel (0) target = $region33
    $region32: #{bert_prediction_head_transform.1} parent=1 // pred_region
      %76 = dma.done [#allocation6], 96
    $region33: #{bert_prediction_head_transform.1} parent=1 // pred_fallthru
      _
    // Predicated region
    $region34: #{bert_prediction_head_transform.1} parent=1 // pred_check
      _
    $region35: #{bert_prediction_head_transform.1} parent=1 // pred_check_branch
      %78 = sbr.rel (0) target = $region37
    $region36: #{bert_prediction_head_transform.1} parent=1 // pred_region
      %79 = dma.done [#allocation9], 96
    $region37: #{bert_prediction_head_transform.1} parent=1 // pred_fallthru
      _
    // Predicated region
    $region38: #{bert_prediction_head_transform.1} parent=1 // pred_check
      _
    $region39: #{bert_prediction_head_transform.1} parent=1 // pred_check_branch
      %81 = sbr.rel (0) target = $region41
    $region40: #{bert_prediction_head_transform.1} parent=1 // pred_region
      %82 = dma.done [#allocation9], 96
    $region41: #{bert_prediction_head_transform.1} parent=1 // pred_fallthru
      _
    %v86 = vld [vmem:[#allocation2] sm:$0xff]
    %v87 = vld [vmem:[#allocation2 + $0x8] sm:$0xff]
    %v88 = vld [vmem:[#allocation2 + $0x10] sm:$0xff]
    %v89 = vld [vmem:[#allocation2 + $0x18] sm:$0xff]
    %v90 = vld [vmem:[#allocation2 + $0x20] sm:$0xff]
    %v91 = vld [vmem:[#allocation2 + $0x28] sm:$0xff]
    %v92 = vld [vmem:[#allocation2 + $0x30] sm:$0xff]
    %v93 = vld [vmem:[#allocation2 + $0x38] sm:$0xff]
    %v94 = vld [vmem:[#allocation2 + $0x40] sm:$0xff]
    %v95 = vld [vmem:[#allocation2 + $0x48] sm:$0xff]
    %v96 = vld [vmem:[#allocation2 + $0x50] sm:$0xff]
    %v97 = vld [vmem:[#allocation2 + $0x58] sm:$0xff]
    %v98 = vpack.c.bf16 %v92, %v86
    %v99 = vpack.c.bf16 %v93, %v87
    %v100 = vpack.c.bf16 %v94, %v88
    %v101 = vpack.c.bf16 %v95, %v89
    %v102 = vpack.c.bf16 %v96, %v90
    %v103 = vpack.c.bf16 %v97, %v91
    %v104 = vld [vmem:[#allocation5] sm:$0xff]
    %v105 = vld [vmem:[#allocation5 + $0x8] sm:$0xff]
    %v106 = vld [vmem:[#allocation5 + $0x10] sm:$0xff]
    %v107 = vld [vmem:[#allocation5 + $0x18] sm:$0xff]
    %v108 = vld [vmem:[#allocation5 + $0x20] sm:$0xff]
    %v109 = vld [vmem:[#allocation5 + $0x28] sm:$0xff]
    %v110 = vld [vmem:[#allocation5 + $0x30] sm:$0xff]
    %v111 = vld [vmem:[#allocation5 + $0x38] sm:$0xff]
    %v112 = vld [vmem:[#allocation5 + $0x40] sm:$0xff]
    %v113 = vld [vmem:[#allocation5 + $0x48] sm:$0xff]
    %v114 = vld [vmem:[#allocation5 + $0x50] sm:$0xff]
    %v115 = vld [vmem:[#allocation5 + $0x58] sm:$0xff]
    %v116 = vld [vmem:[#allocation5 + $0x60] sm:$0xff]
    %v117 = vld [vmem:[#allocation5 + $0x68] sm:$0xff]
    %v118 = vld [vmem:[#allocation5 + $0x70] sm:$0xff]
    %v119 = vld [vmem:[#allocation5 + $0x78] sm:$0xff]
    %v120 = vld [vmem:[#allocation5 + $0x80] sm:$0xff]
    %v121 = vld [vmem:[#allocation5 + $0x88] sm:$0xff]
    %v122 = vld [vmem:[#allocation5 + $0x90] sm:$0xff]
    %v123 = vld [vmem:[#allocation5 + $0x98] sm:$0xff]
    %v124 = vld [vmem:[#allocation5 + $0xa0] sm:$0xff]
    %v125 = vld [vmem:[#allocation5 + $0xa8] sm:$0xff]
    %v126 = vld [vmem:[#allocation5 + $0xb0] sm:$0xff]
    %v127 = vld [vmem:[#allocation5 + $0xb8] sm:$0xff]
    %v128 = vld [vmem:[#allocation5 + $0xc0] sm:$0xff]
    %v129 = vld [vmem:[#allocation5 + $0xc8] sm:$0xff]
    %v130 = vld [vmem:[#allocation5 + $0xd0] sm:$0xff]
    %v131 = vld [vmem:[#allocation5 + $0xd8] sm:$0xff]
    %v132 = vld [vmem:[#allocation5 + $0xe0] sm:$0xff]
    %v133 = vld [vmem:[#allocation5 + $0xe8] sm:$0xff]
    %v134 = vld [vmem:[#allocation5 + $0xf0] sm:$0xff]
    %v135 = vld [vmem:[#allocation5 + $0xf8] sm:$0xff]
    %v136 = vld [vmem:[#allocation5 + $0x100] sm:$0xff]
    %v137 = vld [vmem:[#allocation5 + $0x108] sm:$0xff]
    %v138 = vld [vmem:[#allocation5 + $0x110] sm:$0xff]
    %v139 = vld [vmem:[#allocation5 + $0x118] sm:$0xff]
    %v140 = vld [vmem:[#allocation5 + $0x120] sm:$0xff]
    %v141 = vld [vmem:[#allocation5 + $0x128] sm:$0xff]
    %v142 = vld [vmem:[#allocation5 + $0x130] sm:$0xff]
    %v143 = vld [vmem:[#allocation5 + $0x138] sm:$0xff]
    %v144 = vld [vmem:[#allocation5 + $0x140] sm:$0xff]
    %v145 = vld [vmem:[#allocation5 + $0x148] sm:$0xff]
    %v146 = vld [vmem:[#allocation5 + $0x150] sm:$0xff]
    %v147 = vld [vmem:[#allocation5 + $0x158] sm:$0xff]
    %v148 = vld [vmem:[#allocation5 + $0x160] sm:$0xff]
    %v149 = vld [vmem:[#allocation5 + $0x168] sm:$0xff]
    %v150 = vld [vmem:[#allocation5 + $0x170] sm:$0xff]
    %v151 = vld [vmem:[#allocation5 + $0x178] sm:$0xff]
    %v152 = vld [vmem:[#allocation5 + $0x180] sm:$0xff]
    %v153 = vld [vmem:[#allocation5 + $0x188] sm:$0xff]
    %v154 = vld [vmem:[#allocation5 + $0x190] sm:$0xff]
    %v155 = vld [vmem:[#allocation5 + $0x198] sm:$0xff]
    %v156 = vld [vmem:[#allocation5 + $0x1a0] sm:$0xff]
    %v157 = vld [vmem:[#allocation5 + $0x1a8] sm:$0xff]
    %v158 = vld [vmem:[#allocation5 + $0x1b0] sm:$0xff]
    %v159 = vld [vmem:[#allocation5 + $0x1b8] sm:$0xff]
    %v160 = vld [vmem:[#allocation5 + $0x1c0] sm:$0xff]
    %v161 = vld [vmem:[#allocation5 + $0x1c8] sm:$0xff]
    %v162 = vld [vmem:[#allocation5 + $0x1d0] sm:$0xff]
    %v163 = vld [vmem:[#allocation5 + $0x1d8] sm:$0xff]
    %v164 = vld [vmem:[#allocation5 + $0x1e0] sm:$0xff]
    %v165 = vld [vmem:[#allocation5 + $0x1e8] sm:$0xff]
    %v166 = vld [vmem:[#allocation5 + $0x1f0] sm:$0xff]
    %v167 = vld [vmem:[#allocation5 + $0x1f8] sm:$0xff]
    %v168 = vld [vmem:[#allocation5 + $0x200] sm:$0xff]
    %v169 = vld [vmem:[#allocation5 + $0x208] sm:$0xff]
    %v170 = vld [vmem:[#allocation5 + $0x210] sm:$0xff]
    %v171 = vld [vmem:[#allocation5 + $0x218] sm:$0xff]
    %v172 = vld [vmem:[#allocation5 + $0x220] sm:$0xff]
    %v173 = vld [vmem:[#allocation5 + $0x228] sm:$0xff]
    %v174 = vld [vmem:[#allocation5 + $0x230] sm:$0xff]
    %v175 = vld [vmem:[#allocation5 + $0x238] sm:$0xff]
    %v176 = vld [vmem:[#allocation5 + $0x240] sm:$0xff]
    %v177 = vld [vmem:[#allocation5 + $0x248] sm:$0xff]
    %v178 = vld [vmem:[#allocation5 + $0x250] sm:$0xff]
    %v179 = vld [vmem:[#allocation5 + $0x258] sm:$0xff]
    %v180 = vld [vmem:[#allocation5 + $0x260] sm:$0xff]
    %v181 = vld [vmem:[#allocation5 + $0x268] sm:$0xff]
    %v182 = vld [vmem:[#allocation5 + $0x270] sm:$0xff]
    %v183 = vld [vmem:[#allocation5 + $0x278] sm:$0xff]
    %v184 = vld [vmem:[#allocation5 + $0x280] sm:$0xff]
    %v185 = vld [vmem:[#allocation5 + $0x288] sm:$0xff]
    %v186 = vld [vmem:[#allocation5 + $0x290] sm:$0xff]
    %v187 = vld [vmem:[#allocation5 + $0x298] sm:$0xff]
    %v188 = vld [vmem:[#allocation5 + $0x2a0] sm:$0xff]
    %v189 = vld [vmem:[#allocation5 + $0x2a8] sm:$0xff]
    %v190 = vld [vmem:[#allocation5 + $0x2b0] sm:$0xff]
    %v191 = vld [vmem:[#allocation5 + $0x2b8] sm:$0xff]
    %v192 = vld [vmem:[#allocation5 + $0x2c0] sm:$0xff]
    %v193 = vld [vmem:[#allocation5 + $0x2c8] sm:$0xff]
    %v194 = vld [vmem:[#allocation5 + $0x2d0] sm:$0xff]
    %v195 = vld [vmem:[#allocation5 + $0x2d8] sm:$0xff]
    %v196 = vld [vmem:[#allocation5 + $0x2e0] sm:$0xff]
    %v197 = vld [vmem:[#allocation5 + $0x2e8] sm:$0xff]
    %v198 = vld [vmem:[#allocation5 + $0x2f0] sm:$0xff]
    %v199 = vld [vmem:[#allocation5 + $0x2f8] sm:$0xff]
    %v200 = vld [vmem:[#allocation5 + $0x300] sm:$0xff]
    %v201 = vld [vmem:[#allocation5 + $0x308] sm:$0xff]
    %v202 = vld [vmem:[#allocation5 + $0x310] sm:$0xff]
    %v203 = vld [vmem:[#allocation5 + $0x318] sm:$0xff]
    %v204 = vld [vmem:[#allocation5 + $0x320] sm:$0xff]
    %v205 = vld [vmem:[#allocation5 + $0x328] sm:$0xff]
    %v206 = vld [vmem:[#allocation5 + $0x330] sm:$0xff]
    %v207 = vld [vmem:[#allocation5 + $0x338] sm:$0xff]
    %v208 = vld [vmem:[#allocation5 + $0x340] sm:$0xff]
    %v209 = vld [vmem:[#allocation5 + $0x348] sm:$0xff]
    %v210 = vld [vmem:[#allocation5 + $0x350] sm:$0xff]
    %v211 = vld [vmem:[#allocation5 + $0x358] sm:$0xff]
    %v212 = vld [vmem:[#allocation5 + $0x360] sm:$0xff]
    %v213 = vld [vmem:[#allocation5 + $0x368] sm:$0xff]
    %v214 = vld [vmem:[#allocation5 + $0x370] sm:$0xff]
    %v215 = vld [vmem:[#allocation5 + $0x378] sm:$0xff]
    %v216 = vld [vmem:[#allocation5 + $0x380] sm:$0xff]
    %v217 = vld [vmem:[#allocation5 + $0x388] sm:$0xff]
    %v218 = vld [vmem:[#allocation5 + $0x390] sm:$0xff]
    %v219 = vld [vmem:[#allocation5 + $0x398] sm:$0xff]
    %v220 = vld [vmem:[#allocation5 + $0x3a0] sm:$0xff]
    %v221 = vld [vmem:[#allocation5 + $0x3a8] sm:$0xff]
    %v222 = vld [vmem:[#allocation5 + $0x3b0] sm:$0xff]
    %v223 = vld [vmem:[#allocation5 + $0x3b8] sm:$0xff]
    %v224 = vld [vmem:[#allocation5 + $0x3c0] sm:$0xff]
    %v225 = vld [vmem:[#allocation5 + $0x3c8] sm:$0xff]
    %v226 = vld [vmem:[#allocation5 + $0x3d0] sm:$0xff]
    %v227 = vld [vmem:[#allocation5 + $0x3d8] sm:$0xff]
    %v228 = vld [vmem:[#allocation5 + $0x3e0] sm:$0xff]
    %v229 = vld [vmem:[#allocation5 + $0x3e8] sm:$0xff]
    %v230 = vld [vmem:[#allocation5 + $0x3f0] sm:$0xff]
    %v231 = vld [vmem:[#allocation5 + $0x3f8] sm:$0xff]
    %v232 = vld [vmem:[#allocation5 + $0x400] sm:$0xff]
    %v233 = vld [vmem:[#allocation5 + $0x408] sm:$0xff]
    %v234 = vld [vmem:[#allocation5 + $0x410] sm:$0xff]
    %v235 = vld [vmem:[#allocation5 + $0x418] sm:$0xff]
    %v236 = vld [vmem:[#allocation5 + $0x420] sm:$0xff]
    %v237 = vld [vmem:[#allocation5 + $0x428] sm:$0xff]
    %v238 = vld [vmem:[#allocation5 + $0x430] sm:$0xff]
    %v239 = vld [vmem:[#allocation5 + $0x438] sm:$0xff]
    %v240 = vld [vmem:[#allocation5 + $0x440] sm:$0xff]
    %v241 = vld [vmem:[#allocation5 + $0x448] sm:$0xff]
    %v242 = vld [vmem:[#allocation5 + $0x450] sm:$0xff]
    %v243 = vld [vmem:[#allocation5 + $0x458] sm:$0xff]
    %v244 = vld [vmem:[#allocation5 + $0x460] sm:$0xff]
    %v245 = vld [vmem:[#allocation5 + $0x468] sm:$0xff]
    %v246 = vld [vmem:[#allocation5 + $0x470] sm:$0xff]
    %v247 = vld [vmem:[#allocation5 + $0x478] sm:$0xff]
    %v248 = vld [vmem:[#allocation5 + $0x480] sm:$0xff]
    %v249 = vld [vmem:[#allocation5 + $0x488] sm:$0xff]
    %v250 = vld [vmem:[#allocation5 + $0x490] sm:$0xff]
    %v251 = vld [vmem:[#allocation5 + $0x498] sm:$0xff]
    %v252 = vld [vmem:[#allocation5 + $0x4a0] sm:$0xff]
    %v253 = vld [vmem:[#allocation5 + $0x4a8] sm:$0xff]
    %v254 = vld [vmem:[#allocation5 + $0x4b0] sm:$0xff]
    %v255 = vld [vmem:[#allocation5 + $0x4b8] sm:$0xff]
    %v256 = vld [vmem:[#allocation5 + $0x4c0] sm:$0xff]
    %v257 = vld [vmem:[#allocation5 + $0x4c8] sm:$0xff]
    %v258 = vld [vmem:[#allocation5 + $0x4d0] sm:$0xff]
    %v259 = vld [vmem:[#allocation5 + $0x4d8] sm:$0xff]
    %v260 = vld [vmem:[#allocation5 + $0x4e0] sm:$0xff]
    %v261 = vld [vmem:[#allocation5 + $0x4e8] sm:$0xff]
    %v262 = vld [vmem:[#allocation5 + $0x4f0] sm:$0xff]
    %v263 = vld [vmem:[#allocation5 + $0x4f8] sm:$0xff]
    %v264 = vld [vmem:[#allocation5 + $0x500] sm:$0xff]
    %v265 = vld [vmem:[#allocation5 + $0x508] sm:$0xff]
    %v266 = vld [vmem:[#allocation5 + $0x510] sm:$0xff]
    %v267 = vld [vmem:[#allocation5 + $0x518] sm:$0xff]
    %v268 = vld [vmem:[#allocation5 + $0x520] sm:$0xff]
    %v269 = vld [vmem:[#allocation5 + $0x528] sm:$0xff]
    %v270 = vld [vmem:[#allocation5 + $0x530] sm:$0xff]
    %v271 = vld [vmem:[#allocation5 + $0x538] sm:$0xff]
    %v272 = vld [vmem:[#allocation5 + $0x540] sm:$0xff]
    %v273 = vld [vmem:[#allocation5 + $0x548] sm:$0xff]
    %v274 = vld [vmem:[#allocation5 + $0x550] sm:$0xff]
    %v275 = vld [vmem:[#allocation5 + $0x558] sm:$0xff]
    %v276 = vld [vmem:[#allocation5 + $0x560] sm:$0xff]
    %v277 = vld [vmem:[#allocation5 + $0x568] sm:$0xff]
    %v278 = vld [vmem:[#allocation5 + $0x570] sm:$0xff]
    %v279 = vld [vmem:[#allocation5 + $0x578] sm:$0xff]
    %v280 = vld [vmem:[#allocation5 + $0x580] sm:$0xff]
    %v281 = vld [vmem:[#allocation5 + $0x588] sm:$0xff]
    %v282 = vld [vmem:[#allocation5 + $0x590] sm:$0xff]
    %v283 = vld [vmem:[#allocation5 + $0x598] sm:$0xff]
    %v284 = vld [vmem:[#allocation5 + $0x5a0] sm:$0xff]
    %v285 = vld [vmem:[#allocation5 + $0x5a8] sm:$0xff]
    %v286 = vld [vmem:[#allocation5 + $0x5b0] sm:$0xff]
    %v287 = vld [vmem:[#allocation5 + $0x5b8] sm:$0xff]
    %v288 = vld [vmem:[#allocation5 + $0x5c0] sm:$0xff]
    %v289 = vld [vmem:[#allocation5 + $0x5c8] sm:$0xff]
    %v290 = vld [vmem:[#allocation5 + $0x5d0] sm:$0xff]
    %v291 = vld [vmem:[#allocation5 + $0x5d8] sm:$0xff]
    %v292 = vld [vmem:[#allocation5 + $0x5e0] sm:$0xff]
    %v293 = vld [vmem:[#allocation5 + $0x5e8] sm:$0xff]
    %v294 = vld [vmem:[#allocation5 + $0x5f0] sm:$0xff]
    %v295 = vld [vmem:[#allocation5 + $0x5f8] sm:$0xff]
    %v296 = vld [vmem:[#allocation5 + $0x600] sm:$0xff]
    %v297 = vld [vmem:[#allocation5 + $0x608] sm:$0xff]
    %v298 = vld [vmem:[#allocation5 + $0x610] sm:$0xff]
    %v299 = vld [vmem:[#allocation5 + $0x618] sm:$0xff]
    %v300 = vld [vmem:[#allocation5 + $0x620] sm:$0xff]
    %v301 = vld [vmem:[#allocation5 + $0x628] sm:$0xff]
    %v302 = vld [vmem:[#allocation5 + $0x630] sm:$0xff]
    %v303 = vld [vmem:[#allocation5 + $0x638] sm:$0xff]
    %v304 = vld [vmem:[#allocation5 + $0x640] sm:$0xff]
    %v305 = vld [vmem:[#allocation5 + $0x648] sm:$0xff]
    %v306 = vld [vmem:[#allocation5 + $0x650] sm:$0xff]
    %v307 = vld [vmem:[#allocation5 + $0x658] sm:$0xff]
    %v308 = vld [vmem:[#allocation5 + $0x660] sm:$0xff]
    %v309 = vld [vmem:[#allocation5 + $0x668] sm:$0xff]
    %v310 = vld [vmem:[#allocation5 + $0x670] sm:$0xff]
    %v311 = vld [vmem:[#allocation5 + $0x678] sm:$0xff]
    %v312 = vld [vmem:[#allocation5 + $0x680] sm:$0xff]
    %v313 = vld [vmem:[#allocation5 + $0x688] sm:$0xff]
    %v314 = vld [vmem:[#allocation5 + $0x690] sm:$0xff]
    %v315 = vld [vmem:[#allocation5 + $0x698] sm:$0xff]
    %v316 = vld [vmem:[#allocation5 + $0x6a0] sm:$0xff]
    %v317 = vld [vmem:[#allocation5 + $0x6a8] sm:$0xff]
    %v318 = vld [vmem:[#allocation5 + $0x6b0] sm:$0xff]
    %v319 = vld [vmem:[#allocation5 + $0x6b8] sm:$0xff]
    %v320 = vld [vmem:[#allocation5 + $0x6c0] sm:$0xff]
    %v321 = vld [vmem:[#allocation5 + $0x6c8] sm:$0xff]
    %v322 = vld [vmem:[#allocation5 + $0x6d0] sm:$0xff]
    %v323 = vld [vmem:[#allocation5 + $0x6d8] sm:$0xff]
    %v324 = vld [vmem:[#allocation5 + $0x6e0] sm:$0xff]
    %v325 = vld [vmem:[#allocation5 + $0x6e8] sm:$0xff]
    %v326 = vld [vmem:[#allocation5 + $0x6f0] sm:$0xff]
    %v327 = vld [vmem:[#allocation5 + $0x6f8] sm:$0xff]
    %v328 = vld [vmem:[#allocation5 + $0x700] sm:$0xff]
    %v329 = vld [vmem:[#allocation5 + $0x708] sm:$0xff]
    %v330 = vld [vmem:[#allocation5 + $0x710] sm:$0xff]
    %v331 = vld [vmem:[#allocation5 + $0x718] sm:$0xff]
    %v332 = vld [vmem:[#allocation5 + $0x720] sm:$0xff]
    %v333 = vld [vmem:[#allocation5 + $0x728] sm:$0xff]
    %v334 = vld [vmem:[#allocation5 + $0x730] sm:$0xff]
    %v335 = vld [vmem:[#allocation5 + $0x738] sm:$0xff]
    %v336 = vld [vmem:[#allocation5 + $0x740] sm:$0xff]
    %v337 = vld [vmem:[#allocation5 + $0x748] sm:$0xff]
    %v338 = vld [vmem:[#allocation5 + $0x750] sm:$0xff]
    %v339 = vld [vmem:[#allocation5 + $0x758] sm:$0xff]
    %v340 = vld [vmem:[#allocation5 + $0x760] sm:$0xff]
    %v341 = vld [vmem:[#allocation5 + $0x768] sm:$0xff]
    %v342 = vld [vmem:[#allocation5 + $0x770] sm:$0xff]
    %v343 = vld [vmem:[#allocation5 + $0x778] sm:$0xff]
    %v344 = vld [vmem:[#allocation5 + $0x780] sm:$0xff]
    %v345 = vld [vmem:[#allocation5 + $0x788] sm:$0xff]
    %v346 = vld [vmem:[#allocation5 + $0x790] sm:$0xff]
    %v347 = vld [vmem:[#allocation5 + $0x798] sm:$0xff]
    %v348 = vld [vmem:[#allocation5 + $0x7a0] sm:$0xff]
    %v349 = vld [vmem:[#allocation5 + $0x7a8] sm:$0xff]
    %v350 = vld [vmem:[#allocation5 + $0x7b0] sm:$0xff]
    %v351 = vld [vmem:[#allocation5 + $0x7b8] sm:$0xff]
    %v352 = vld [vmem:[#allocation5 + $0x7c0] sm:$0xff]
    %v353 = vld [vmem:[#allocation5 + $0x7c8] sm:$0xff]
    %v354 = vld [vmem:[#allocation5 + $0x7d0] sm:$0xff]
    %v355 = vld [vmem:[#allocation5 + $0x7d8] sm:$0xff]
    %v356 = vld [vmem:[#allocation5 + $0x7e0] sm:$0xff]
    %v357 = vld [vmem:[#allocation5 + $0x7e8] sm:$0xff]
    %v358 = vld [vmem:[#allocation5 + $0x7f0] sm:$0xff]
    %v359 = vld [vmem:[#allocation5 + $0x7f8] sm:$0xff]
    %v360 = vld [vmem:[#allocation5 + $0x800] sm:$0xff]
    %v361 = vld [vmem:[#allocation5 + $0x808] sm:$0xff]
    %v362 = vld [vmem:[#allocation5 + $0x810] sm:$0xff]
    %v363 = vld [vmem:[#allocation5 + $0x818] sm:$0xff]
    %v364 = vld [vmem:[#allocation5 + $0x820] sm:$0xff]
    %v365 = vld [vmem:[#allocation5 + $0x828] sm:$0xff]
    %v366 = vld [vmem:[#allocation5 + $0x830] sm:$0xff]
    %v367 = vld [vmem:[#allocation5 + $0x838] sm:$0xff]
    %v368 = vld [vmem:[#allocation5 + $0x840] sm:$0xff]
    %v369 = vld [vmem:[#allocation5 + $0x848] sm:$0xff]
    %v370 = vld [vmem:[#allocation5 + $0x850] sm:$0xff]
    %v371 = vld [vmem:[#allocation5 + $0x858] sm:$0xff]
    %v372 = vld [vmem:[#allocation5 + $0x860] sm:$0xff]
    %v373 = vld [vmem:[#allocation5 + $0x868] sm:$0xff]
    %v374 = vld [vmem:[#allocation5 + $0x870] sm:$0xff]
    %v375 = vld [vmem:[#allocation5 + $0x878] sm:$0xff]
    %v376 = vld [vmem:[#allocation5 + $0x880] sm:$0xff]
    %v377 = vld [vmem:[#allocation5 + $0x888] sm:$0xff]
    %v378 = vld [vmem:[#allocation5 + $0x890] sm:$0xff]
    %v379 = vld [vmem:[#allocation5 + $0x898] sm:$0xff]
    %v380 = vld [vmem:[#allocation5 + $0x8a0] sm:$0xff]
    %v381 = vld [vmem:[#allocation5 + $0x8a8] sm:$0xff]
    %v382 = vld [vmem:[#allocation5 + $0x8b0] sm:$0xff]
    %v383 = vld [vmem:[#allocation5 + $0x8b8] sm:$0xff]
    %v384 = vld [vmem:[#allocation5 + $0x8c0] sm:$0xff]
    %v385 = vld [vmem:[#allocation5 + $0x8c8] sm:$0xff]
    %v386 = vld [vmem:[#allocation5 + $0x8d0] sm:$0xff]
    %v387 = vld [vmem:[#allocation5 + $0x8d8] sm:$0xff]
    %v388 = vld [vmem:[#allocation5 + $0x8e0] sm:$0xff]
    %v389 = vld [vmem:[#allocation5 + $0x8e8] sm:$0xff]
    %v390 = vld [vmem:[#allocation5 + $0x8f0] sm:$0xff]
    %v391 = vld [vmem:[#allocation5 + $0x8f8] sm:$0xff]
    %v392 = vld [vmem:[#allocation7] sm:$0x3f]
    %v394 = vlaneseq
    %v395 = vshrl.u32 %v394, 7
    %v396 = vsub.s32 0, %v395
    %v397 = vrot.slane %v392, %v396
    %v398 = vlaneseq
    %v399 = vshrl.u32 %v398, 7
    %v400 = vsub.s32 1, %v399
    %v401 = vrot.slane %v392, %v400
    %v402 = vlaneseq
    %v403 = vshrl.u32 %v402, 7
    %v404 = vsub.s32 2, %v403
    %v405 = vrot.slane %v392, %v404
    %v406 = vlaneseq
    %v407 = vshrl.u32 %v406, 7
    %v408 = vsub.s32 3, %v407
    %v409 = vrot.slane %v392, %v408
    %v410 = vlaneseq
    %v411 = vshrl.u32 %v410, 7
    %v412 = vsub.s32 4, %v411
    %v413 = vrot.slane %v392, %v412
    %v414 = vlaneseq
    %v415 = vshrl.u32 %v414, 7
    %v416 = vsub.s32 5, %v415
    %v417 = vrot.slane %v392, %v416
    %v712 = vunpack.c.l.b16 %v104
    %v713 = vunpack.c.h.b16 %v104
    %v714 = vunpack.c.l.b16 %v105
    %v715 = vunpack.c.h.b16 %v105
    %v716 = vunpack.c.l.b16 %v106
    %v717 = vunpack.c.h.b16 %v106
    %v718 = vunpack.c.l.b16 %v107
    %v719 = vunpack.c.h.b16 %v107
    %v720 = vunpack.c.l.b16 %v108
    %v721 = vunpack.c.h.b16 %v108
    %v722 = vunpack.c.l.b16 %v109
    %v723 = vunpack.c.h.b16 %v109
    %v724 = vunpack.c.l.b16 %v110
    %v725 = vunpack.c.h.b16 %v110
    %v726 = vunpack.c.l.b16 %v111
    %v727 = vunpack.c.h.b16 %v111
    %v728 = vunpack.c.l.b16 %v112
    %v729 = vunpack.c.h.b16 %v112
    %v730 = vunpack.c.l.b16 %v113
    %v731 = vunpack.c.h.b16 %v113
    %v732 = vunpack.c.l.b16 %v114
    %v733 = vunpack.c.h.b16 %v114
    %v734 = vunpack.c.l.b16 %v115
    %v735 = vunpack.c.h.b16 %v115
    %v736 = vunpack.c.l.b16 %v116
    %v737 = vunpack.c.h.b16 %v116
    %v738 = vunpack.c.l.b16 %v117
    %v739 = vunpack.c.h.b16 %v117
    %v740 = vunpack.c.l.b16 %v118
    %v741 = vunpack.c.h.b16 %v118
    %v742 = vunpack.c.l.b16 %v119
    %v743 = vunpack.c.h.b16 %v119
    %v744 = vunpack.c.l.b16 %v120
    %v745 = vunpack.c.h.b16 %v120
    %v746 = vunpack.c.l.b16 %v121
    %v747 = vunpack.c.h.b16 %v121
    %v748 = vunpack.c.l.b16 %v122
    %v749 = vunpack.c.h.b16 %v122
    %v750 = vunpack.c.l.b16 %v123
    %v751 = vunpack.c.h.b16 %v123
    %v752 = vunpack.c.l.b16 %v124
    %v753 = vunpack.c.h.b16 %v124
    %v754 = vunpack.c.l.b16 %v125
    %v755 = vunpack.c.h.b16 %v125
    %v756 = vunpack.c.l.b16 %v126
    %v757 = vunpack.c.h.b16 %v126
    %v758 = vunpack.c.l.b16 %v127
    %v759 = vunpack.c.h.b16 %v127
    %v760 = vunpack.c.l.b16 %v128
    %v761 = vunpack.c.h.b16 %v128
    %v762 = vunpack.c.l.b16 %v129
    %v763 = vunpack.c.h.b16 %v129
    %v764 = vunpack.c.l.b16 %v130
    %v765 = vunpack.c.h.b16 %v130
    %v766 = vunpack.c.l.b16 %v131
    %v767 = vunpack.c.h.b16 %v131
    %v768 = vunpack.c.l.b16 %v132
    %v769 = vunpack.c.h.b16 %v132
    %v770 = vunpack.c.l.b16 %v133
    %v771 = vunpack.c.h.b16 %v133
    %v772 = vunpack.c.l.b16 %v134
    %v773 = vunpack.c.h.b16 %v134
    %v774 = vunpack.c.l.b16 %v135
    %v775 = vunpack.c.h.b16 %v135
    %v776 = vunpack.c.l.b16 %v136
    %v777 = vunpack.c.h.b16 %v136
    %v778 = vunpack.c.l.b16 %v137
    %v779 = vunpack.c.h.b16 %v137
    %v780 = vunpack.c.l.b16 %v138
    %v781 = vunpack.c.h.b16 %v138
    %v782 = vunpack.c.l.b16 %v139
    %v783 = vunpack.c.h.b16 %v139
    %v784 = vunpack.c.l.b16 %v140
    %v785 = vunpack.c.h.b16 %v140
    %v786 = vunpack.c.l.b16 %v141
    %v787 = vunpack.c.h.b16 %v141
    %v788 = vunpack.c.l.b16 %v142
    %v789 = vunpack.c.h.b16 %v142
    %v790 = vunpack.c.l.b16 %v143
    %v791 = vunpack.c.h.b16 %v143
    %v792 = vunpack.c.l.b16 %v144
    %v793 = vunpack.c.h.b16 %v144
    %v794 = vunpack.c.l.b16 %v145
    %v795 = vunpack.c.h.b16 %v145
    %v796 = vunpack.c.l.b16 %v146
    %v797 = vunpack.c.h.b16 %v146
    %v798 = vunpack.c.l.b16 %v147
    %v799 = vunpack.c.h.b16 %v147
    %v800 = vunpack.c.l.b16 %v148
    %v801 = vunpack.c.h.b16 %v148
    %v802 = vunpack.c.l.b16 %v149
    %v803 = vunpack.c.h.b16 %v149
    %v804 = vunpack.c.l.b16 %v150
    %v805 = vunpack.c.h.b16 %v150
    %v806 = vunpack.c.l.b16 %v151
    %v807 = vunpack.c.h.b16 %v151
    %v808 = vunpack.c.l.b16 %v152
    %v809 = vunpack.c.h.b16 %v152
    %v810 = vunpack.c.l.b16 %v153
    %v811 = vunpack.c.h.b16 %v153
    %v812 = vunpack.c.l.b16 %v154
    %v813 = vunpack.c.h.b16 %v154
    %v814 = vunpack.c.l.b16 %v155
    %v815 = vunpack.c.h.b16 %v155
    %v816 = vunpack.c.l.b16 %v156
    %v817 = vunpack.c.h.b16 %v156
    %v818 = vunpack.c.l.b16 %v157
    %v819 = vunpack.c.h.b16 %v157
    %v820 = vunpack.c.l.b16 %v158
    %v821 = vunpack.c.h.b16 %v158
    %v822 = vunpack.c.l.b16 %v159
    %v823 = vunpack.c.h.b16 %v159
    %v824 = vunpack.c.l.b16 %v160
    %v825 = vunpack.c.h.b16 %v160
    %v826 = vunpack.c.l.b16 %v161
    %v827 = vunpack.c.h.b16 %v161
    %v828 = vunpack.c.l.b16 %v162
    %v829 = vunpack.c.h.b16 %v162
    %v830 = vunpack.c.l.b16 %v163
    %v831 = vunpack.c.h.b16 %v163
    %v832 = vunpack.c.l.b16 %v164
    %v833 = vunpack.c.h.b16 %v164
    %v834 = vunpack.c.l.b16 %v165
    %v835 = vunpack.c.h.b16 %v165
    %v836 = vunpack.c.l.b16 %v166
    %v837 = vunpack.c.h.b16 %v166
    %v838 = vunpack.c.l.b16 %v167
    %v839 = vunpack.c.h.b16 %v167
    %v840 = vunpack.c.l.b16 %v168
    %v841 = vunpack.c.h.b16 %v168
    %v842 = vunpack.c.l.b16 %v169
    %v843 = vunpack.c.h.b16 %v169
    %v844 = vunpack.c.l.b16 %v170
    %v845 = vunpack.c.h.b16 %v170
    %v846 = vunpack.c.l.b16 %v171
    %v847 = vunpack.c.h.b16 %v171
    %v848 = vunpack.c.l.b16 %v172
    %v849 = vunpack.c.h.b16 %v172
    %v850 = vunpack.c.l.b16 %v173
    %v851 = vunpack.c.h.b16 %v173
    %v852 = vunpack.c.l.b16 %v174
    %v853 = vunpack.c.h.b16 %v174
    %v854 = vunpack.c.l.b16 %v175
    %v855 = vunpack.c.h.b16 %v175
    %v856 = vunpack.c.l.b16 %v176
    %v857 = vunpack.c.h.b16 %v176
    %v858 = vunpack.c.l.b16 %v177
    %v859 = vunpack.c.h.b16 %v177
    %v860 = vunpack.c.l.b16 %v178
    %v861 = vunpack.c.h.b16 %v178
    %v862 = vunpack.c.l.b16 %v179
    %v863 = vunpack.c.h.b16 %v179
    %v864 = vunpack.c.l.b16 %v180
    %v865 = vunpack.c.h.b16 %v180
    %v866 = vunpack.c.l.b16 %v181
    %v867 = vunpack.c.h.b16 %v181
    %v868 = vunpack.c.l.b16 %v182
    %v869 = vunpack.c.h.b16 %v182
    %v870 = vunpack.c.l.b16 %v183
    %v871 = vunpack.c.h.b16 %v183
    %v872 = vunpack.c.l.b16 %v184
    %v873 = vunpack.c.h.b16 %v184
    %v874 = vunpack.c.l.b16 %v185
    %v875 = vunpack.c.h.b16 %v185
    %v876 = vunpack.c.l.b16 %v186
    %v877 = vunpack.c.h.b16 %v186
    %v878 = vunpack.c.l.b16 %v187
    %v879 = vunpack.c.h.b16 %v187
    %v880 = vunpack.c.l.b16 %v188
    %v881 = vunpack.c.h.b16 %v188
    %v882 = vunpack.c.l.b16 %v189
    %v883 = vunpack.c.h.b16 %v189
    %v884 = vunpack.c.l.b16 %v190
    %v885 = vunpack.c.h.b16 %v190
    %v886 = vunpack.c.l.b16 %v191
    %v887 = vunpack.c.h.b16 %v191
    %v888 = vunpack.c.l.b16 %v192
    %v889 = vunpack.c.h.b16 %v192
    %v890 = vunpack.c.l.b16 %v193
    %v891 = vunpack.c.h.b16 %v193
    %v892 = vunpack.c.l.b16 %v194
    %v893 = vunpack.c.h.b16 %v194
    %v894 = vunpack.c.l.b16 %v195
    %v895 = vunpack.c.h.b16 %v195
    %v896 = vunpack.c.l.b16 %v196
    %v897 = vunpack.c.h.b16 %v196
    %v898 = vunpack.c.l.b16 %v197
    %v899 = vunpack.c.h.b16 %v197
    %v900 = vunpack.c.l.b16 %v198
    %v901 = vunpack.c.h.b16 %v198
    %v902 = vunpack.c.l.b16 %v199
    %v903 = vunpack.c.h.b16 %v199
    %v904 = vunpack.c.l.b16 %v200
    %v905 = vunpack.c.h.b16 %v200
    %v906 = vunpack.c.l.b16 %v201
    %v907 = vunpack.c.h.b16 %v201
    %v908 = vunpack.c.l.b16 %v202
    %v909 = vunpack.c.h.b16 %v202
    %v910 = vunpack.c.l.b16 %v203
    %v911 = vunpack.c.h.b16 %v203
    %v912 = vunpack.c.l.b16 %v204
    %v913 = vunpack.c.h.b16 %v204
    %v914 = vunpack.c.l.b16 %v205
    %v915 = vunpack.c.h.b16 %v205
    %v916 = vunpack.c.l.b16 %v206
    %v917 = vunpack.c.h.b16 %v206
    %v918 = vunpack.c.l.b16 %v207
    %v919 = vunpack.c.h.b16 %v207
    %v920 = vunpack.c.l.b16 %v208
    %v921 = vunpack.c.h.b16 %v208
    %v922 = vunpack.c.l.b16 %v209
    %v923 = vunpack.c.h.b16 %v209
    %v924 = vunpack.c.l.b16 %v210
    %v925 = vunpack.c.h.b16 %v210
    %v926 = vunpack.c.l.b16 %v211
    %v927 = vunpack.c.h.b16 %v211
    %v928 = vunpack.c.l.b16 %v212
    %v929 = vunpack.c.h.b16 %v212
    %v930 = vunpack.c.l.b16 %v213
    %v931 = vunpack.c.h.b16 %v213
    %v932 = vunpack.c.l.b16 %v214
    %v933 = vunpack.c.h.b16 %v214
    %v934 = vunpack.c.l.b16 %v215
    %v935 = vunpack.c.h.b16 %v215
    %v936 = vunpack.c.l.b16 %v216
    %v937 = vunpack.c.h.b16 %v216
    %v938 = vunpack.c.l.b16 %v217
    %v939 = vunpack.c.h.b16 %v217
    %v940 = vunpack.c.l.b16 %v218
    %v941 = vunpack.c.h.b16 %v218
    %v942 = vunpack.c.l.b16 %v219
    %v943 = vunpack.c.h.b16 %v219
    %v944 = vunpack.c.l.b16 %v220
    %v945 = vunpack.c.h.b16 %v220
    %v946 = vunpack.c.l.b16 %v221
    %v947 = vunpack.c.h.b16 %v221
    %v948 = vunpack.c.l.b16 %v222
    %v949 = vunpack.c.h.b16 %v222
    %v950 = vunpack.c.l.b16 %v223
    %v951 = vunpack.c.h.b16 %v223
    %v952 = vunpack.c.l.b16 %v224
    %v953 = vunpack.c.h.b16 %v224
    %v954 = vunpack.c.l.b16 %v225
    %v955 = vunpack.c.h.b16 %v225
    %v956 = vunpack.c.l.b16 %v226
    %v957 = vunpack.c.h.b16 %v226
    %v958 = vunpack.c.l.b16 %v227
    %v959 = vunpack.c.h.b16 %v227
    %v960 = vunpack.c.l.b16 %v228
    %v961 = vunpack.c.h.b16 %v228
    %v962 = vunpack.c.l.b16 %v229
    %v963 = vunpack.c.h.b16 %v229
    %v964 = vunpack.c.l.b16 %v230
    %v965 = vunpack.c.h.b16 %v230
    %v966 = vunpack.c.l.b16 %v231
    %v967 = vunpack.c.h.b16 %v231
    %v968 = vunpack.c.l.b16 %v232
    %v969 = vunpack.c.h.b16 %v232
    %v970 = vunpack.c.l.b16 %v233
    %v971 = vunpack.c.h.b16 %v233
    %v972 = vunpack.c.l.b16 %v234
    %v973 = vunpack.c.h.b16 %v234
    %v974 = vunpack.c.l.b16 %v235
    %v975 = vunpack.c.h.b16 %v235
    %v976 = vunpack.c.l.b16 %v236
    %v977 = vunpack.c.h.b16 %v236
    %v978 = vunpack.c.l.b16 %v237
    %v979 = vunpack.c.h.b16 %v237
    %v980 = vunpack.c.l.b16 %v238
    %v981 = vunpack.c.h.b16 %v238
    %v982 = vunpack.c.l.b16 %v239
    %v983 = vunpack.c.h.b16 %v239
    %v984 = vunpack.c.l.b16 %v240
    %v985 = vunpack.c.h.b16 %v240
    %v986 = vunpack.c.l.b16 %v241
    %v987 = vunpack.c.h.b16 %v241
    %v988 = vunpack.c.l.b16 %v242
    %v989 = vunpack.c.h.b16 %v242
    %v990 = vunpack.c.l.b16 %v243
    %v991 = vunpack.c.h.b16 %v243
    %v992 = vunpack.c.l.b16 %v244
    %v993 = vunpack.c.h.b16 %v244
    %v994 = vunpack.c.l.b16 %v245
    %v995 = vunpack.c.h.b16 %v245
    %v996 = vunpack.c.l.b16 %v246
    %v997 = vunpack.c.h.b16 %v246
    %v998 = vunpack.c.l.b16 %v247
    %v999 = vunpack.c.h.b16 %v247
    %v1000 = vunpack.c.l.b16 %v248
    %v1001 = vunpack.c.h.b16 %v248
    %v1002 = vunpack.c.l.b16 %v249
    %v1003 = vunpack.c.h.b16 %v249
    %v1004 = vunpack.c.l.b16 %v250
    %v1005 = vunpack.c.h.b16 %v250
    %v1006 = vunpack.c.l.b16 %v251
    %v1007 = vunpack.c.h.b16 %v251
    %v1008 = vunpack.c.l.b16 %v252
    %v1009 = vunpack.c.h.b16 %v252
    %v1010 = vunpack.c.l.b16 %v253
    %v1011 = vunpack.c.h.b16 %v253
    %v1012 = vunpack.c.l.b16 %v254
    %v1013 = vunpack.c.h.b16 %v254
    %v1014 = vunpack.c.l.b16 %v255
    %v1015 = vunpack.c.h.b16 %v255
    %v1016 = vunpack.c.l.b16 %v256
    %v1017 = vunpack.c.h.b16 %v256
    %v1018 = vunpack.c.l.b16 %v257
    %v1019 = vunpack.c.h.b16 %v257
    %v1020 = vunpack.c.l.b16 %v258
    %v1021 = vunpack.c.h.b16 %v258
    %v1022 = vunpack.c.l.b16 %v259
    %v1023 = vunpack.c.h.b16 %v259
    %v1024 = vunpack.c.l.b16 %v260
    %v1025 = vunpack.c.h.b16 %v260
    %v1026 = vunpack.c.l.b16 %v261
    %v1027 = vunpack.c.h.b16 %v261
    %v1028 = vunpack.c.l.b16 %v262
    %v1029 = vunpack.c.h.b16 %v262
    %v1030 = vunpack.c.l.b16 %v263
    %v1031 = vunpack.c.h.b16 %v263
    %v1032 = vunpack.c.l.b16 %v264
    %v1033 = vunpack.c.h.b16 %v264
    %v1034 = vunpack.c.l.b16 %v265
    %v1035 = vunpack.c.h.b16 %v265
    %v1036 = vunpack.c.l.b16 %v266
    %v1037 = vunpack.c.h.b16 %v266
    %v1038 = vunpack.c.l.b16 %v267
    %v1039 = vunpack.c.h.b16 %v267
    %v1040 = vunpack.c.l.b16 %v268
    %v1041 = vunpack.c.h.b16 %v268
    %v1042 = vunpack.c.l.b16 %v269
    %v1043 = vunpack.c.h.b16 %v269
    %v1044 = vunpack.c.l.b16 %v270
    %v1045 = vunpack.c.h.b16 %v270
    %v1046 = vunpack.c.l.b16 %v271
    %v1047 = vunpack.c.h.b16 %v271
    %v1048 = vunpack.c.l.b16 %v272
    %v1049 = vunpack.c.h.b16 %v272
    %v1050 = vunpack.c.l.b16 %v273
    %v1051 = vunpack.c.h.b16 %v273
    %v1052 = vunpack.c.l.b16 %v274
    %v1053 = vunpack.c.h.b16 %v274
    %v1054 = vunpack.c.l.b16 %v275
    %v1055 = vunpack.c.h.b16 %v275
    %v1056 = vunpack.c.l.b16 %v276
    %v1057 = vunpack.c.h.b16 %v276
    %v1058 = vunpack.c.l.b16 %v277
    %v1059 = vunpack.c.h.b16 %v277
    %v1060 = vunpack.c.l.b16 %v278
    %v1061 = vunpack.c.h.b16 %v278
    %v1062 = vunpack.c.l.b16 %v279
    %v1063 = vunpack.c.h.b16 %v279
    %v1064 = vunpack.c.l.b16 %v280
    %v1065 = vunpack.c.h.b16 %v280
    %v1066 = vunpack.c.l.b16 %v281
    %v1067 = vunpack.c.h.b16 %v281
    %v1068 = vunpack.c.l.b16 %v282
    %v1069 = vunpack.c.h.b16 %v282
    %v1070 = vunpack.c.l.b16 %v283
    %v1071 = vunpack.c.h.b16 %v283
    %v1072 = vunpack.c.l.b16 %v284
    %v1073 = vunpack.c.h.b16 %v284
    %v1074 = vunpack.c.l.b16 %v285
    %v1075 = vunpack.c.h.b16 %v285
    %v1076 = vunpack.c.l.b16 %v286
    %v1077 = vunpack.c.h.b16 %v286
    %v1078 = vunpack.c.l.b16 %v287
    %v1079 = vunpack.c.h.b16 %v287
    %v1080 = vunpack.c.l.b16 %v288
    %v1081 = vunpack.c.h.b16 %v288
    %v1082 = vunpack.c.l.b16 %v289
    %v1083 = vunpack.c.h.b16 %v289
    %v1084 = vunpack.c.l.b16 %v290
    %v1085 = vunpack.c.h.b16 %v290
    %v1086 = vunpack.c.l.b16 %v291
    %v1087 = vunpack.c.h.b16 %v291
    %v1088 = vunpack.c.l.b16 %v292
    %v1089 = vunpack.c.h.b16 %v292
    %v1090 = vunpack.c.l.b16 %v293
    %v1091 = vunpack.c.h.b16 %v293
    %v1092 = vunpack.c.l.b16 %v294
    %v1093 = vunpack.c.h.b16 %v294
    %v1094 = vunpack.c.l.b16 %v295
    %v1095 = vunpack.c.h.b16 %v295
    %v1096 = vunpack.c.l.b16 %v296
    %v1097 = vunpack.c.h.b16 %v296
    %v1098 = vunpack.c.l.b16 %v297
    %v1099 = vunpack.c.h.b16 %v297
    %v1100 = vunpack.c.l.b16 %v298
    %v1101 = vunpack.c.h.b16 %v298
    %v1102 = vunpack.c.l.b16 %v299
    %v1103 = vunpack.c.h.b16 %v299
    %v1104 = vunpack.c.l.b16 %v300
    %v1105 = vunpack.c.h.b16 %v300
    %v1106 = vunpack.c.l.b16 %v301
    %v1107 = vunpack.c.h.b16 %v301
    %v1108 = vunpack.c.l.b16 %v302
    %v1109 = vunpack.c.h.b16 %v302
    %v1110 = vunpack.c.l.b16 %v303
    %v1111 = vunpack.c.h.b16 %v303
    %v1112 = vunpack.c.l.b16 %v304
    %v1113 = vunpack.c.h.b16 %v304
    %v1114 = vunpack.c.l.b16 %v305
    %v1115 = vunpack.c.h.b16 %v305
    %v1116 = vunpack.c.l.b16 %v306
    %v1117 = vunpack.c.h.b16 %v306
    %v1118 = vunpack.c.l.b16 %v307
    %v1119 = vunpack.c.h.b16 %v307
    %v1120 = vunpack.c.l.b16 %v308
    %v1121 = vunpack.c.h.b16 %v308
    %v1122 = vunpack.c.l.b16 %v309
    %v1123 = vunpack.c.h.b16 %v309
    %v1124 = vunpack.c.l.b16 %v310
    %v1125 = vunpack.c.h.b16 %v310
    %v1126 = vunpack.c.l.b16 %v311
    %v1127 = vunpack.c.h.b16 %v311
    %v1128 = vunpack.c.l.b16 %v312
    %v1129 = vunpack.c.h.b16 %v312
    %v1130 = vunpack.c.l.b16 %v313
    %v1131 = vunpack.c.h.b16 %v313
    %v1132 = vunpack.c.l.b16 %v314
    %v1133 = vunpack.c.h.b16 %v314
    %v1134 = vunpack.c.l.b16 %v315
    %v1135 = vunpack.c.h.b16 %v315
    %v1136 = vunpack.c.l.b16 %v316
    %v1137 = vunpack.c.h.b16 %v316
    %v1138 = vunpack.c.l.b16 %v317
    %v1139 = vunpack.c.h.b16 %v317
    %v1140 = vunpack.c.l.b16 %v318
    %v1141 = vunpack.c.h.b16 %v318
    %v1142 = vunpack.c.l.b16 %v319
    %v1143 = vunpack.c.h.b16 %v319
    %v1144 = vunpack.c.l.b16 %v320
    %v1145 = vunpack.c.h.b16 %v320
    %v1146 = vunpack.c.l.b16 %v321
    %v1147 = vunpack.c.h.b16 %v321
    %v1148 = vunpack.c.l.b16 %v322
    %v1149 = vunpack.c.h.b16 %v322
    %v1150 = vunpack.c.l.b16 %v323
    %v1151 = vunpack.c.h.b16 %v323
    %v1152 = vunpack.c.l.b16 %v324
    %v1153 = vunpack.c.h.b16 %v324
    %v1154 = vunpack.c.l.b16 %v325
    %v1155 = vunpack.c.h.b16 %v325
    %v1156 = vunpack.c.l.b16 %v326
    %v1157 = vunpack.c.h.b16 %v326
    %v1158 = vunpack.c.l.b16 %v327
    %v1159 = vunpack.c.h.b16 %v327
    %v1160 = vunpack.c.l.b16 %v328
    %v1161 = vunpack.c.h.b16 %v328
    %v1162 = vunpack.c.l.b16 %v329
    %v1163 = vunpack.c.h.b16 %v329
    %v1164 = vunpack.c.l.b16 %v330
    %v1165 = vunpack.c.h.b16 %v330
    %v1166 = vunpack.c.l.b16 %v331
    %v1167 = vunpack.c.h.b16 %v331
    %v1168 = vunpack.c.l.b16 %v332
    %v1169 = vunpack.c.h.b16 %v332
    %v1170 = vunpack.c.l.b16 %v333
    %v1171 = vunpack.c.h.b16 %v333
    %v1172 = vunpack.c.l.b16 %v334
    %v1173 = vunpack.c.h.b16 %v334
    %v1174 = vunpack.c.l.b16 %v335
    %v1175 = vunpack.c.h.b16 %v335
    %v1176 = vunpack.c.l.b16 %v336
    %v1177 = vunpack.c.h.b16 %v336
    %v1178 = vunpack.c.l.b16 %v337
    %v1179 = vunpack.c.h.b16 %v337
    %v1180 = vunpack.c.l.b16 %v338
    %v1181 = vunpack.c.h.b16 %v338
    %v1182 = vunpack.c.l.b16 %v339
    %v1183 = vunpack.c.h.b16 %v339
    %v1184 = vunpack.c.l.b16 %v340
    %v1185 = vunpack.c.h.b16 %v340
    %v1186 = vunpack.c.l.b16 %v341
    %v1187 = vunpack.c.h.b16 %v341
    %v1188 = vunpack.c.l.b16 %v342
    %v1189 = vunpack.c.h.b16 %v342
    %v1190 = vunpack.c.l.b16 %v343
    %v1191 = vunpack.c.h.b16 %v343
    %v1192 = vunpack.c.l.b16 %v344
    %v1193 = vunpack.c.h.b16 %v344
    %v1194 = vunpack.c.l.b16 %v345
    %v1195 = vunpack.c.h.b16 %v345
    %v1196 = vunpack.c.l.b16 %v346
    %v1197 = vunpack.c.h.b16 %v346
    %v1198 = vunpack.c.l.b16 %v347
    %v1199 = vunpack.c.h.b16 %v347
    %v1200 = vunpack.c.l.b16 %v348
    %v1201 = vunpack.c.h.b16 %v348
    %v1202 = vunpack.c.l.b16 %v349
    %v1203 = vunpack.c.h.b16 %v349
    %v1204 = vunpack.c.l.b16 %v350
    %v1205 = vunpack.c.h.b16 %v350
    %v1206 = vunpack.c.l.b16 %v351
    %v1207 = vunpack.c.h.b16 %v351
    %v1208 = vunpack.c.l.b16 %v352
    %v1209 = vunpack.c.h.b16 %v352
    %v1210 = vunpack.c.l.b16 %v353
    %v1211 = vunpack.c.h.b16 %v353
    %v1212 = vunpack.c.l.b16 %v354
    %v1213 = vunpack.c.h.b16 %v354
    %v1214 = vunpack.c.l.b16 %v355
    %v1215 = vunpack.c.h.b16 %v355
    %v1216 = vunpack.c.l.b16 %v356
    %v1217 = vunpack.c.h.b16 %v356
    %v1218 = vunpack.c.l.b16 %v357
    %v1219 = vunpack.c.h.b16 %v357
    %v1220 = vunpack.c.l.b16 %v358
    %v1221 = vunpack.c.h.b16 %v358
    %v1222 = vunpack.c.l.b16 %v359
    %v1223 = vunpack.c.h.b16 %v359
    %v1224 = vunpack.c.l.b16 %v360
    %v1225 = vunpack.c.h.b16 %v360
    %v1226 = vunpack.c.l.b16 %v361
    %v1227 = vunpack.c.h.b16 %v361
    %v1228 = vunpack.c.l.b16 %v362
    %v1229 = vunpack.c.h.b16 %v362
    %v1230 = vunpack.c.l.b16 %v363
    %v1231 = vunpack.c.h.b16 %v363
    %v1232 = vunpack.c.l.b16 %v364
    %v1233 = vunpack.c.h.b16 %v364
    %v1234 = vunpack.c.l.b16 %v365
    %v1235 = vunpack.c.h.b16 %v365
    %v1236 = vunpack.c.l.b16 %v366
    %v1237 = vunpack.c.h.b16 %v366
    %v1238 = vunpack.c.l.b16 %v367
    %v1239 = vunpack.c.h.b16 %v367
    %v1240 = vunpack.c.l.b16 %v368
    %v1241 = vunpack.c.h.b16 %v368
    %v1242 = vunpack.c.l.b16 %v369
    %v1243 = vunpack.c.h.b16 %v369
    %v1244 = vunpack.c.l.b16 %v370
    %v1245 = vunpack.c.h.b16 %v370
    %v1246 = vunpack.c.l.b16 %v371
    %v1247 = vunpack.c.h.b16 %v371
    %v1248 = vunpack.c.l.b16 %v372
    %v1249 = vunpack.c.h.b16 %v372
    %v1250 = vunpack.c.l.b16 %v373
    %v1251 = vunpack.c.h.b16 %v373
    %v1252 = vunpack.c.l.b16 %v374
    %v1253 = vunpack.c.h.b16 %v374
    %v1254 = vunpack.c.l.b16 %v375
    %v1255 = vunpack.c.h.b16 %v375
    %v1256 = vunpack.c.l.b16 %v376
    %v1257 = vunpack.c.h.b16 %v376
    %v1258 = vunpack.c.l.b16 %v377
    %v1259 = vunpack.c.h.b16 %v377
    %v1260 = vunpack.c.l.b16 %v378
    %v1261 = vunpack.c.h.b16 %v378
    %v1262 = vunpack.c.l.b16 %v379
    %v1263 = vunpack.c.h.b16 %v379
    %v1264 = vunpack.c.l.b16 %v380
    %v1265 = vunpack.c.h.b16 %v380
    %v1266 = vunpack.c.l.b16 %v381
    %v1267 = vunpack.c.h.b16 %v381
    %v1268 = vunpack.c.l.b16 %v382
    %v1269 = vunpack.c.h.b16 %v382
    %v1270 = vunpack.c.l.b16 %v383
    %v1271 = vunpack.c.h.b16 %v383
    %v1272 = vunpack.c.l.b16 %v384
    %v1273 = vunpack.c.h.b16 %v384
    %v1274 = vunpack.c.l.b16 %v385
    %v1275 = vunpack.c.h.b16 %v385
    %v1276 = vunpack.c.l.b16 %v386
    %v1277 = vunpack.c.h.b16 %v386
    %v1278 = vunpack.c.l.b16 %v387
    %v1279 = vunpack.c.h.b16 %v387
    %v1280 = vunpack.c.l.b16 %v388
    %v1281 = vunpack.c.h.b16 %v388
    %v1282 = vunpack.c.l.b16 %v389
    %v1283 = vunpack.c.h.b16 %v389
    %v1284 = vunpack.c.l.b16 %v390
    %v1285 = vunpack.c.h.b16 %v390
    %v1286 = vunpack.c.l.b16 %v391
    %v1287 = vunpack.c.h.b16 %v391
    %v1288 = vpack.c.b16 %v718, %v712
    %v1289 = vpack.c.b16 %v719, %v713
    %v1290 = vpack.c.b16 %v720, %v714
    %v1291 = vpack.c.b16 %v721, %v715
    %v1292 = vpack.c.b16 %v722, %v716
    %v1293 = vpack.c.b16 %v723, %v717
    %v1294 = vpack.c.b16 %v730, %v724
    %v1295 = vpack.c.b16 %v731, %v725
    %v1296 = vpack.c.b16 %v732, %v726
    %v1297 = vpack.c.b16 %v733, %v727
    %v1298 = vpack.c.b16 %v734, %v728
    %v1299 = vpack.c.b16 %v735, %v729
    %v1300 = vpack.c.b16 %v742, %v736
    %v1301 = vpack.c.b16 %v743, %v737
    %v1302 = vpack.c.b16 %v744, %v738
    %v1303 = vpack.c.b16 %v745, %v739
    %v1304 = vpack.c.b16 %v746, %v740
    %v1305 = vpack.c.b16 %v747, %v741
    %v1306 = vpack.c.b16 %v754, %v748
    %v1307 = vpack.c.b16 %v755, %v749
    %v1308 = vpack.c.b16 %v756, %v750
    %v1309 = vpack.c.b16 %v757, %v751
    %v1310 = vpack.c.b16 %v758, %v752
    %v1311 = vpack.c.b16 %v759, %v753
    %v1312 = vpack.c.b16 %v766, %v760
    %v1313 = vpack.c.b16 %v767, %v761
    %v1314 = vpack.c.b16 %v768, %v762
    %v1315 = vpack.c.b16 %v769, %v763
    %v1316 = vpack.c.b16 %v770, %v764
    %v1317 = vpack.c.b16 %v771, %v765
    %v1318 = vpack.c.b16 %v778, %v772
    %v1319 = vpack.c.b16 %v779, %v773
    %v1320 = vpack.c.b16 %v780, %v774
    %v1321 = vpack.c.b16 %v781, %v775
    %v1322 = vpack.c.b16 %v782, %v776
    %v1323 = vpack.c.b16 %v783, %v777
    %v1324 = vpack.c.b16 %v790, %v784
    %v1325 = vpack.c.b16 %v791, %v785
    %v1326 = vpack.c.b16 %v792, %v786
    %v1327 = vpack.c.b16 %v793, %v787
    %v1328 = vpack.c.b16 %v794, %v788
    %v1329 = vpack.c.b16 %v795, %v789
    %v1330 = vpack.c.b16 %v802, %v796
    %v1331 = vpack.c.b16 %v803, %v797
    %v1332 = vpack.c.b16 %v804, %v798
    %v1333 = vpack.c.b16 %v805, %v799
    %v1334 = vpack.c.b16 %v806, %v800
    %v1335 = vpack.c.b16 %v807, %v801
    %v1336 = vpack.c.b16 %v814, %v808
    %v1337 = vpack.c.b16 %v815, %v809
    %v1338 = vpack.c.b16 %v816, %v810
    %v1339 = vpack.c.b16 %v817, %v811
    %v1340 = vpack.c.b16 %v818, %v812
    %v1341 = vpack.c.b16 %v819, %v813
    %v1342 = vpack.c.b16 %v826, %v820
    %v1343 = vpack.c.b16 %v827, %v821
    %v1344 = vpack.c.b16 %v828, %v822
    %v1345 = vpack.c.b16 %v829, %v823
    %v1346 = vpack.c.b16 %v830, %v824
    %v1347 = vpack.c.b16 %v831, %v825
    %v1348 = vpack.c.b16 %v838, %v832
    %v1349 = vpack.c.b16 %v839, %v833
    %v1350 = vpack.c.b16 %v840, %v834
    %v1351 = vpack.c.b16 %v841, %v835
    %v1352 = vpack.c.b16 %v842, %v836
    %v1353 = vpack.c.b16 %v843, %v837
    %v1354 = vpack.c.b16 %v850, %v844
    %v1355 = vpack.c.b16 %v851, %v845
    %v1356 = vpack.c.b16 %v852, %v846
    %v1357 = vpack.c.b16 %v853, %v847
    %v1358 = vpack.c.b16 %v854, %v848
    %v1359 = vpack.c.b16 %v855, %v849
    %v1360 = vpack.c.b16 %v862, %v856
    %v1361 = vpack.c.b16 %v863, %v857
    %v1362 = vpack.c.b16 %v864, %v858
    %v1363 = vpack.c.b16 %v865, %v859
    %v1364 = vpack.c.b16 %v866, %v860
    %v1365 = vpack.c.b16 %v867, %v861
    %v1366 = vpack.c.b16 %v874, %v868
    %v1367 = vpack.c.b16 %v875, %v869
    %v1368 = vpack.c.b16 %v876, %v870
    %v1369 = vpack.c.b16 %v877, %v871
    %v1370 = vpack.c.b16 %v878, %v872
    %v1371 = vpack.c.b16 %v879, %v873
    %v1372 = vpack.c.b16 %v886, %v880
    %v1373 = vpack.c.b16 %v887, %v881
    %v1374 = vpack.c.b16 %v888, %v882
    %v1375 = vpack.c.b16 %v889, %v883
    %v1376 = vpack.c.b16 %v890, %v884
    %v1377 = vpack.c.b16 %v891, %v885
    %v1378 = vpack.c.b16 %v898, %v892
    %v1379 = vpack.c.b16 %v899, %v893
    %v1380 = vpack.c.b16 %v900, %v894
    %v1381 = vpack.c.b16 %v901, %v895
    %v1382 = vpack.c.b16 %v902, %v896
    %v1383 = vpack.c.b16 %v903, %v897
    %v1384 = vpack.c.b16 %v910, %v904
    %v1385 = vpack.c.b16 %v911, %v905
    %v1386 = vpack.c.b16 %v912, %v906
    %v1387 = vpack.c.b16 %v913, %v907
    %v1388 = vpack.c.b16 %v914, %v908
    %v1389 = vpack.c.b16 %v915, %v909
    %v1390 = vpack.c.b16 %v922, %v916
    %v1391 = vpack.c.b16 %v923, %v917
    %v1392 = vpack.c.b16 %v924, %v918
    %v1393 = vpack.c.b16 %v925, %v919
    %v1394 = vpack.c.b16 %v926, %v920
    %v1395 = vpack.c.b16 %v927, %v921
    %v1396 = vpack.c.b16 %v934, %v928
    %v1397 = vpack.c.b16 %v935, %v929
    %v1398 = vpack.c.b16 %v936, %v930
    %v1399 = vpack.c.b16 %v937, %v931
    %v1400 = vpack.c.b16 %v938, %v932
    %v1401 = vpack.c.b16 %v939, %v933
    %v1402 = vpack.c.b16 %v946, %v940
    %v1403 = vpack.c.b16 %v947, %v941
    %v1404 = vpack.c.b16 %v948, %v942
    %v1405 = vpack.c.b16 %v949, %v943
    %v1406 = vpack.c.b16 %v950, %v944
    %v1407 = vpack.c.b16 %v951, %v945
    %v1408 = vpack.c.b16 %v958, %v952
    %v1409 = vpack.c.b16 %v959, %v953
    %v1410 = vpack.c.b16 %v960, %v954
    %v1411 = vpack.c.b16 %v961, %v955
    %v1412 = vpack.c.b16 %v962, %v956
    %v1413 = vpack.c.b16 %v963, %v957
    %v1414 = vpack.c.b16 %v970, %v964
    %v1415 = vpack.c.b16 %v971, %v965
    %v1416 = vpack.c.b16 %v972, %v966
    %v1417 = vpack.c.b16 %v973, %v967
    %v1418 = vpack.c.b16 %v974, %v968
    %v1419 = vpack.c.b16 %v975, %v969
    %v1420 = vpack.c.b16 %v982, %v976
    %v1421 = vpack.c.b16 %v983, %v977
    %v1422 = vpack.c.b16 %v984, %v978
    %v1423 = vpack.c.b16 %v985, %v979
    %v1424 = vpack.c.b16 %v986, %v980
    %v1425 = vpack.c.b16 %v987, %v981
    %v1426 = vpack.c.b16 %v994, %v988
    %v1427 = vpack.c.b16 %v995, %v989
    %v1428 = vpack.c.b16 %v996, %v990
    %v1429 = vpack.c.b16 %v997, %v991
    %v1430 = vpack.c.b16 %v998, %v992
    %v1431 = vpack.c.b16 %v999, %v993
    %v1432 = vpack.c.b16 %v1006, %v1000
    %v1433 = vpack.c.b16 %v1007, %v1001
    %v1434 = vpack.c.b16 %v1008, %v1002
    %v1435 = vpack.c.b16 %v1009, %v1003
    %v1436 = vpack.c.b16 %v1010, %v1004
    %v1437 = vpack.c.b16 %v1011, %v1005
    %v1438 = vpack.c.b16 %v1018, %v1012
    %v1439 = vpack.c.b16 %v1019, %v1013
    %v1440 = vpack.c.b16 %v1020, %v1014
    %v1441 = vpack.c.b16 %v1021, %v1015
    %v1442 = vpack.c.b16 %v1022, %v1016
    %v1443 = vpack.c.b16 %v1023, %v1017
    %v1444 = vpack.c.b16 %v1030, %v1024
    %v1445 = vpack.c.b16 %v1031, %v1025
    %v1446 = vpack.c.b16 %v1032, %v1026
    %v1447 = vpack.c.b16 %v1033, %v1027
    %v1448 = vpack.c.b16 %v1034, %v1028
    %v1449 = vpack.c.b16 %v1035, %v1029
    %v1450 = vpack.c.b16 %v1042, %v1036
    %v1451 = vpack.c.b16 %v1043, %v1037
    %v1452 = vpack.c.b16 %v1044, %v1038
    %v1453 = vpack.c.b16 %v1045, %v1039
    %v1454 = vpack.c.b16 %v1046, %v1040
    %v1455 = vpack.c.b16 %v1047, %v1041
    %v1456 = vpack.c.b16 %v1054, %v1048
    %v1457 = vpack.c.b16 %v1055, %v1049
    %v1458 = vpack.c.b16 %v1056, %v1050
    %v1459 = vpack.c.b16 %v1057, %v1051
    %v1460 = vpack.c.b16 %v1058, %v1052
    %v1461 = vpack.c.b16 %v1059, %v1053
    %v1462 = vpack.c.b16 %v1066, %v1060
    %v1463 = vpack.c.b16 %v1067, %v1061
    %v1464 = vpack.c.b16 %v1068, %v1062
    %v1465 = vpack.c.b16 %v1069, %v1063
    %v1466 = vpack.c.b16 %v1070, %v1064
    %v1467 = vpack.c.b16 %v1071, %v1065
    %v1468 = vpack.c.b16 %v1078, %v1072
    %v1469 = vpack.c.b16 %v1079, %v1073
    %v1470 = vpack.c.b16 %v1080, %v1074
    %v1471 = vpack.c.b16 %v1081, %v1075
    %v1472 = vpack.c.b16 %v1082, %v1076
    %v1473 = vpack.c.b16 %v1083, %v1077
    %v1474 = vpack.c.b16 %v1090, %v1084
    %v1475 = vpack.c.b16 %v1091, %v1085
    %v1476 = vpack.c.b16 %v1092, %v1086
    %v1477 = vpack.c.b16 %v1093, %v1087
    %v1478 = vpack.c.b16 %v1094, %v1088
    %v1479 = vpack.c.b16 %v1095, %v1089
    %v1480 = vpack.c.b16 %v1102, %v1096
    %v1481 = vpack.c.b16 %v1103, %v1097
    %v1482 = vpack.c.b16 %v1104, %v1098
    %v1483 = vpack.c.b16 %v1105, %v1099
    %v1484 = vpack.c.b16 %v1106, %v1100
    %v1485 = vpack.c.b16 %v1107, %v1101
    %v1486 = vpack.c.b16 %v1114, %v1108
    %v1487 = vpack.c.b16 %v1115, %v1109
    %v1488 = vpack.c.b16 %v1116, %v1110
    %v1489 = vpack.c.b16 %v1117, %v1111
    %v1490 = vpack.c.b16 %v1118, %v1112
    %v1491 = vpack.c.b16 %v1119, %v1113
    %v1492 = vpack.c.b16 %v1126, %v1120
    %v1493 = vpack.c.b16 %v1127, %v1121
    %v1494 = vpack.c.b16 %v1128, %v1122
    %v1495 = vpack.c.b16 %v1129, %v1123
    %v1496 = vpack.c.b16 %v1130, %v1124
    %v1497 = vpack.c.b16 %v1131, %v1125
    %v1498 = vpack.c.b16 %v1138, %v1132
    %v1499 = vpack.c.b16 %v1139, %v1133
    %v1500 = vpack.c.b16 %v1140, %v1134
    %v1501 = vpack.c.b16 %v1141, %v1135
    %v1502 = vpack.c.b16 %v1142, %v1136
    %v1503 = vpack.c.b16 %v1143, %v1137
    %v1504 = vpack.c.b16 %v1150, %v1144
    %v1505 = vpack.c.b16 %v1151, %v1145
    %v1506 = vpack.c.b16 %v1152, %v1146
    %v1507 = vpack.c.b16 %v1153, %v1147
    %v1508 = vpack.c.b16 %v1154, %v1148
    %v1509 = vpack.c.b16 %v1155, %v1149
    %v1510 = vpack.c.b16 %v1162, %v1156
    %v1511 = vpack.c.b16 %v1163, %v1157
    %v1512 = vpack.c.b16 %v1164, %v1158
    %v1513 = vpack.c.b16 %v1165, %v1159
    %v1514 = vpack.c.b16 %v1166, %v1160
    %v1515 = vpack.c.b16 %v1167, %v1161
    %v1516 = vpack.c.b16 %v1174, %v1168
    %v1517 = vpack.c.b16 %v1175, %v1169
    %v1518 = vpack.c.b16 %v1176, %v1170
    %v1519 = vpack.c.b16 %v1177, %v1171
    %v1520 = vpack.c.b16 %v1178, %v1172
    %v1521 = vpack.c.b16 %v1179, %v1173
    %v1522 = vpack.c.b16 %v1186, %v1180
    %v1523 = vpack.c.b16 %v1187, %v1181
    %v1524 = vpack.c.b16 %v1188, %v1182
    %v1525 = vpack.c.b16 %v1189, %v1183
    %v1526 = vpack.c.b16 %v1190, %v1184
    %v1527 = vpack.c.b16 %v1191, %v1185
    %v1528 = vpack.c.b16 %v1198, %v1192
    %v1529 = vpack.c.b16 %v1199, %v1193
    %v1530 = vpack.c.b16 %v1200, %v1194
    %v1531 = vpack.c.b16 %v1201, %v1195
    %v1532 = vpack.c.b16 %v1202, %v1196
    %v1533 = vpack.c.b16 %v1203, %v1197
    %v1534 = vpack.c.b16 %v1210, %v1204
    %v1535 = vpack.c.b16 %v1211, %v1205
    %v1536 = vpack.c.b16 %v1212, %v1206
    %v1537 = vpack.c.b16 %v1213, %v1207
    %v1538 = vpack.c.b16 %v1214, %v1208
    %v1539 = vpack.c.b16 %v1215, %v1209
    %v1540 = vpack.c.b16 %v1222, %v1216
    %v1541 = vpack.c.b16 %v1223, %v1217
    %v1542 = vpack.c.b16 %v1224, %v1218
    %v1543 = vpack.c.b16 %v1225, %v1219
    %v1544 = vpack.c.b16 %v1226, %v1220
    %v1545 = vpack.c.b16 %v1227, %v1221
    %v1546 = vpack.c.b16 %v1234, %v1228
    %v1547 = vpack.c.b16 %v1235, %v1229
    %v1548 = vpack.c.b16 %v1236, %v1230
    %v1549 = vpack.c.b16 %v1237, %v1231
    %v1550 = vpack.c.b16 %v1238, %v1232
    %v1551 = vpack.c.b16 %v1239, %v1233
    %v1552 = vpack.c.b16 %v1246, %v1240
    %v1553 = vpack.c.b16 %v1247, %v1241
    %v1554 = vpack.c.b16 %v1248, %v1242
    %v1555 = vpack.c.b16 %v1249, %v1243
    %v1556 = vpack.c.b16 %v1250, %v1244
    %v1557 = vpack.c.b16 %v1251, %v1245
    %v1558 = vpack.c.b16 %v1258, %v1252
    %v1559 = vpack.c.b16 %v1259, %v1253
    %v1560 = vpack.c.b16 %v1260, %v1254
    %v1561 = vpack.c.b16 %v1261, %v1255
    %v1562 = vpack.c.b16 %v1262, %v1256
    %v1563 = vpack.c.b16 %v1263, %v1257
    %v1564 = vpack.c.b16 %v1270, %v1264
    %v1565 = vpack.c.b16 %v1271, %v1265
    %v1566 = vpack.c.b16 %v1272, %v1266
    %v1567 = vpack.c.b16 %v1273, %v1267
    %v1568 = vpack.c.b16 %v1274, %v1268
    %v1569 = vpack.c.b16 %v1275, %v1269
    %v1570 = vpack.c.b16 %v1282, %v1276
    %v1571 = vpack.c.b16 %v1283, %v1277
    %v1572 = vpack.c.b16 %v1284, %v1278
    %v1573 = vpack.c.b16 %v1285, %v1279
    %v1574 = vpack.c.b16 %v1286, %v1280
    %v1575 = vpack.c.b16 %v1287, %v1281
    %1864 = vmatprep.subr.bf16.mxu0 %v1331
    %1865 = vmatpush1.bf16.msra.mxu0 %v1330
    %1866 = vmatprep.subr.bf16.mxu0 %v1325
    %1867 = vmatpush1.bf16.msra.mxu0 %v1324
    %1868 = vmatprep.subr.bf16.mxu0 %v1319
    %1869 = vmatpush1.bf16.msra.mxu0 %v1318
    %1870 = vmatprep.subr.bf16.mxu0 %v1313
    %1871 = vmatpush1.bf16.msra.mxu0 %v1312
    %1872 = vmatprep.subr.bf16.mxu0 %v1307
    %1873 = vmatpush1.bf16.msra.mxu0 %v1306
    %1874 = vmatprep.subr.bf16.mxu0 %v1301
    %1875 = vmatpush1.bf16.msra.mxu0 %v1300
    %1876 = vmatprep.subr.bf16.mxu0 %v1295
    %1877 = vmatpush1.bf16.msra.mxu0 %v1294
    %1878 = vmatprep.subr.bf16.mxu0 %v1289
    %1879 = vmatpush1.bf16.msra.mxu0 %v1288
    %1880 = vmatprep.subr.bf16.mxu0 %v1379
    %1881 = vmatpush2.bf16.msra.mxu0 %v1378
    %1882 = vmatprep.subr.bf16.mxu0 %v1373
    %1883 = vmatpush2.bf16.msra.mxu0 %v1372
    %1884 = vmatprep.subr.bf16.mxu0 %v1367
    %1885 = vmatpush2.bf16.msra.mxu0 %v1366
    %1886 = vmatprep.subr.bf16.mxu0 %v1361
    %1887 = vmatpush2.bf16.msra.mxu0 %v1360
    %1888 = vmatprep.subr.bf16.mxu0 %v1355
    %1889 = vmatpush2.bf16.msra.mxu0 %v1354
    %1890 = vmatprep.subr.bf16.mxu0 %v1349
    %1891 = vmatpush2.bf16.msra.mxu0 %v1348
    %1892 = vmatprep.subr.bf16.mxu0 %v1343
    %1893 = vmatpush2.bf16.msra.mxu0 %v1342
    %1894 = vmatprep.subr.bf16.mxu0 %v1337
    %1895 = vmatpush2.bf16.msra.mxu0 %v1336
    %1896 = vmatprep.mubr.bf16.mxu0 %v99
    %1897 = vmatmul.mubr.bf16.gmra.mxu0 %v98
    %v1898 = vpop.f32.mrf.mxu0
    %v1899 = vadd.f32 %v397, %v1898
    %v1900 = vpop.f32.mrf.mxu0
    %v1901 = vadd.f32 %v401, %v1900
    %v1902 = vpop.f32.mrf.mxu0
    %v1903 = vadd.f32 %v397, %v1902
    %v1904 = vpop.f32.mrf.mxu0
    %v1905 = vadd.f32 %v401, %v1904
    %1906 = vdwg.mxu0
    %1907 = vmatprep.subr.bf16.mxu0 %v1427
    %1908 = vmatpush1.bf16.msra.mxu0 %v1426
    %1909 = vmatprep.subr.bf16.mxu0 %v1421
    %1910 = vmatpush1.bf16.msra.mxu0 %v1420
    %1911 = vmatprep.subr.bf16.mxu0 %v1415
    %1912 = vmatpush1.bf16.msra.mxu0 %v1414
    %1913 = vmatprep.subr.bf16.mxu0 %v1409
    %1914 = vmatpush1.bf16.msra.mxu0 %v1408
    %1915 = vmatprep.subr.bf16.mxu0 %v1403
    %1916 = vmatpush1.bf16.msra.mxu0 %v1402
    %1917 = vmatprep.subr.bf16.mxu0 %v1397
    %1918 = vmatpush1.bf16.msra.mxu0 %v1396
    %1919 = vmatprep.subr.bf16.mxu0 %v1391
    %1920 = vmatpush1.bf16.msra.mxu0 %v1390
    %1921 = vmatprep.subr.bf16.mxu0 %v1385
    %1922 = vmatpush1.bf16.msra.mxu0 %v1384
    %1923 = vmatprep.subr.bf16.mxu0 %v1475
    %1924 = vmatpush2.bf16.msra.mxu0 %v1474
    %1925 = vmatprep.subr.bf16.mxu0 %v1469
    %1926 = vmatpush2.bf16.msra.mxu0 %v1468
    %1927 = vmatprep.subr.bf16.mxu0 %v1463
    %1928 = vmatpush2.bf16.msra.mxu0 %v1462
    %1929 = vmatprep.subr.bf16.mxu0 %v1457
    %1930 = vmatpush2.bf16.msra.mxu0 %v1456
    %1931 = vmatprep.subr.bf16.mxu0 %v1451
    %1932 = vmatpush2.bf16.msra.mxu0 %v1450
    %1933 = vmatprep.subr.bf16.mxu0 %v1445
    %1934 = vmatpush2.bf16.msra.mxu0 %v1444
    %1935 = vmatprep.subr.bf16.mxu0 %v1439
    %1936 = vmatpush2.bf16.msra.mxu0 %v1438
    %1937 = vmatprep.subr.bf16.mxu0 %v1433
    %1938 = vmatpush2.bf16.msra.mxu0 %v1432
    %1939 = vmatprep.mubr.bf16.mxu0 %v101
    %1940 = vmatmul.mubr.bf16.gmra.mxu0 %v100
    %v1941 = vpop.f32.mrf.mxu0
    %v1942 = vadd.f32 %v1899, %v1941
    %v1943 = vpop.f32.mrf.mxu0
    %v1944 = vadd.f32 %v1901, %v1943
    %v1945 = vpop.f32.mrf.mxu0
    %v1946 = vadd.f32 %v1903, %v1945
    %v1947 = vpop.f32.mrf.mxu0
    %v1948 = vadd.f32 %v1905, %v1947
    %1949 = vdwg.mxu0
    %1950 = vmatprep.subr.bf16.mxu0 %v1523
    %1951 = vmatpush1.bf16.msra.mxu0 %v1522
    %1952 = vmatprep.subr.bf16.mxu0 %v1517
    %1953 = vmatpush1.bf16.msra.mxu0 %v1516
    %1954 = vmatprep.subr.bf16.mxu0 %v1511
    %1955 = vmatpush1.bf16.msra.mxu0 %v1510
    %1956 = vmatprep.subr.bf16.mxu0 %v1505
    %1957 = vmatpush1.bf16.msra.mxu0 %v1504
    %1958 = vmatprep.subr.bf16.mxu0 %v1499
    %1959 = vmatpush1.bf16.msra.mxu0 %v1498
    %1960 = vmatprep.subr.bf16.mxu0 %v1493
    %1961 = vmatpush1.bf16.msra.mxu0 %v1492
    %1962 = vmatprep.subr.bf16.mxu0 %v1487
    %1963 = vmatpush1.bf16.msra.mxu0 %v1486
    %1964 = vmatprep.subr.bf16.mxu0 %v1481
    %1965 = vmatpush1.bf16.msra.mxu0 %v1480
    %1966 = vmatprep.subr.bf16.mxu0 %v1571
    %1967 = vmatpush2.bf16.msra.mxu0 %v1570
    %1968 = vmatprep.subr.bf16.mxu0 %v1565
    %1969 = vmatpush2.bf16.msra.mxu0 %v1564
    %1970 = vmatprep.subr.bf16.mxu0 %v1559
    %1971 = vmatpush2.bf16.msra.mxu0 %v1558
    %1972 = vmatprep.subr.bf16.mxu0 %v1553
    %1973 = vmatpush2.bf16.msra.mxu0 %v1552
    %1974 = vmatprep.subr.bf16.mxu0 %v1547
    %1975 = vmatpush2.bf16.msra.mxu0 %v1546
    %1976 = vmatprep.subr.bf16.mxu0 %v1541
    %1977 = vmatpush2.bf16.msra.mxu0 %v1540
    %1978 = vmatprep.subr.bf16.mxu0 %v1535
    %1979 = vmatpush2.bf16.msra.mxu0 %v1534
    %1980 = vmatprep.subr.bf16.mxu0 %v1529
    %1981 = vmatpush2.bf16.msra.mxu0 %v1528
    %1982 = vmatprep.mubr.bf16.mxu0 %v103
    %1983 = vmatmul.mubr.bf16.gmra.mxu0 %v102
    %v1984 = vpop.f32.mrf.mxu0
    %v1985 = vadd.f32 %v1942, %v1984
    %v1986 = vpop.f32.mrf.mxu0
    %v1987 = vadd.f32 %v1944, %v1986
    %v1988 = vpop.f32.mrf.mxu0
    %v1989 = vadd.f32 %v1946, %v1988
    %v1990 = vpop.f32.mrf.mxu0
    %v1991 = vadd.f32 %v1948, %v1990
    %1992 = vdwg.mxu0
    %1993 = vmatprep.subr.bf16.mxu0 %v1333
    %1994 = vmatpush1.bf16.msra.mxu0 %v1332
    %1995 = vmatprep.subr.bf16.mxu0 %v1327
    %1996 = vmatpush1.bf16.msra.mxu0 %v1326
    %1997 = vmatprep.subr.bf16.mxu0 %v1321
    %1998 = vmatpush1.bf16.msra.mxu0 %v1320
    %1999 = vmatprep.subr.bf16.mxu0 %v1315
    %2000 = vmatpush1.bf16.msra.mxu0 %v1314
    %2001 = vmatprep.subr.bf16.mxu0 %v1309
    %2002 = vmatpush1.bf16.msra.mxu0 %v1308
    %2003 = vmatprep.subr.bf16.mxu0 %v1303
    %2004 = vmatpush1.bf16.msra.mxu0 %v1302
    %2005 = vmatprep.subr.bf16.mxu0 %v1297
    %2006 = vmatpush1.bf16.msra.mxu0 %v1296
    %2007 = vmatprep.subr.bf16.mxu0 %v1291
    %2008 = vmatpush1.bf16.msra.mxu0 %v1290
    %2009 = vmatprep.subr.bf16.mxu0 %v1381
    %2010 = vmatpush2.bf16.msra.mxu0 %v1380
    %2011 = vmatprep.subr.bf16.mxu0 %v1375
    %2012 = vmatpush2.bf16.msra.mxu0 %v1374
    %2013 = vmatprep.subr.bf16.mxu0 %v1369
    %2014 = vmatpush2.bf16.msra.mxu0 %v1368
    %2015 = vmatprep.subr.bf16.mxu0 %v1363
    %2016 = vmatpush2.bf16.msra.mxu0 %v1362
    %2017 = vmatprep.subr.bf16.mxu0 %v1357
    %2018 = vmatpush2.bf16.msra.mxu0 %v1356
    %2019 = vmatprep.subr.bf16.mxu0 %v1351
    %2020 = vmatpush2.bf16.msra.mxu0 %v1350
    %2021 = vmatprep.subr.bf16.mxu0 %v1345
    %2022 = vmatpush2.bf16.msra.mxu0 %v1344
    %2023 = vmatprep.subr.bf16.mxu0 %v1339
    %2024 = vmatpush2.bf16.msra.mxu0 %v1338
    %2025 = vmatprep.mubr.bf16.mxu0 %v99
    %2026 = vmatmul.mubr.bf16.gmra.mxu0 %v98
    %v2027 = vpop.f32.mrf.mxu0
    %v2028 = vadd.f32 %v405, %v2027
    %v2029 = vpop.f32.mrf.mxu0
    %v2030 = vadd.f32 %v409, %v2029
    %v2031 = vpop.f32.mrf.mxu0
    %v2032 = vadd.f32 %v405, %v2031
    %v2033 = vpop.f32.mrf.mxu0
    %v2034 = vadd.f32 %v409, %v2033
    %2035 = vdwg.mxu0
    %2036 = vmatprep.subr.bf16.mxu0 %v1429
    %2037 = vmatpush1.bf16.msra.mxu0 %v1428
    %2038 = vmatprep.subr.bf16.mxu0 %v1423
    %2039 = vmatpush1.bf16.msra.mxu0 %v1422
    %2040 = vmatprep.subr.bf16.mxu0 %v1417
    %2041 = vmatpush1.bf16.msra.mxu0 %v1416
    %2042 = vmatprep.subr.bf16.mxu0 %v1411
    %2043 = vmatpush1.bf16.msra.mxu0 %v1410
    %2044 = vmatprep.subr.bf16.mxu0 %v1405
    %2045 = vmatpush1.bf16.msra.mxu0 %v1404
    %2046 = vmatprep.subr.bf16.mxu0 %v1399
    %2047 = vmatpush1.bf16.msra.mxu0 %v1398
    %2048 = vmatprep.subr.bf16.mxu0 %v1393
    %2049 = vmatpush1.bf16.msra.mxu0 %v1392
    %2050 = vmatprep.subr.bf16.mxu0 %v1387
    %2051 = vmatpush1.bf16.msra.mxu0 %v1386
    %2052 = vmatprep.subr.bf16.mxu0 %v1477
    %2053 = vmatpush2.bf16.msra.mxu0 %v1476
    %2054 = vmatprep.subr.bf16.mxu0 %v1471
    %2055 = vmatpush2.bf16.msra.mxu0 %v1470
    %2056 = vmatprep.subr.bf16.mxu0 %v1465
    %2057 = vmatpush2.bf16.msra.mxu0 %v1464
    %2058 = vmatprep.subr.bf16.mxu0 %v1459
    %2059 = vmatpush2.bf16.msra.mxu0 %v1458
    %2060 = vmatprep.subr.bf16.mxu0 %v1453
    %2061 = vmatpush2.bf16.msra.mxu0 %v1452
    %2062 = vmatprep.subr.bf16.mxu0 %v1447
    %2063 = vmatpush2.bf16.msra.mxu0 %v1446
    %2064 = vmatprep.subr.bf16.mxu0 %v1441
    %2065 = vmatpush2.bf16.msra.mxu0 %v1440
    %2066 = vmatprep.subr.bf16.mxu0 %v1435
    %2067 = vmatpush2.bf16.msra.mxu0 %v1434
    %2068 = vmatprep.mubr.bf16.mxu0 %v101
    %2069 = vmatmul.mubr.bf16.gmra.mxu0 %v100
    %v2070 = vpop.f32.mrf.mxu0
    %v2071 = vadd.f32 %v2028, %v2070
    %v2072 = vpop.f32.mrf.mxu0
    %v2073 = vadd.f32 %v2030, %v2072
    %v2074 = vpop.f32.mrf.mxu0
    %v2075 = vadd.f32 %v2032, %v2074
    %v2076 = vpop.f32.mrf.mxu0
    %v2077 = vadd.f32 %v2034, %v2076
    %2078 = vdwg.mxu0
    %2079 = vmatprep.subr.bf16.mxu0 %v1525
    %2080 = vmatpush1.bf16.msra.mxu0 %v1524
    %2081 = vmatprep.subr.bf16.mxu0 %v1519
    %2082 = vmatpush1.bf16.msra.mxu0 %v1518
    %2083 = vmatprep.subr.bf16.mxu0 %v1513
    %2084 = vmatpush1.bf16.msra.mxu0 %v1512
    %2085 = vmatprep.subr.bf16.mxu0 %v1507
    %2086 = vmatpush1.bf16.msra.mxu0 %v1506
    %2087 = vmatprep.subr.bf16.mxu0 %v1501
    %2088 = vmatpush1.bf16.msra.mxu0 %v1500
    %2089 = vmatprep.subr.bf16.mxu0 %v1495
    %2090 = vmatpush1.bf16.msra.mxu0 %v1494
    %2091 = vmatprep.subr.bf16.mxu0 %v1489
    %2092 = vmatpush1.bf16.msra.mxu0 %v1488
    %2093 = vmatprep.subr.bf16.mxu0 %v1483
    %2094 = vmatpush1.bf16.msra.mxu0 %v1482
    %2095 = vmatprep.subr.bf16.mxu0 %v1573
    %2096 = vmatpush2.bf16.msra.mxu0 %v1572
    %2097 = vmatprep.subr.bf16.mxu0 %v1567
    %2098 = vmatpush2.bf16.msra.mxu0 %v1566
    %2099 = vmatprep.subr.bf16.mxu0 %v1561
    %2100 = vmatpush2.bf16.msra.mxu0 %v1560
    %2101 = vmatprep.subr.bf16.mxu0 %v1555
    %2102 = vmatpush2.bf16.msra.mxu0 %v1554
    %2103 = vmatprep.subr.bf16.mxu0 %v1549
    %2104 = vmatpush2.bf16.msra.mxu0 %v1548
    %2105 = vmatprep.subr.bf16.mxu0 %v1543
    %2106 = vmatpush2.bf16.msra.mxu0 %v1542
    %2107 = vmatprep.subr.bf16.mxu0 %v1537
    %2108 = vmatpush2.bf16.msra.mxu0 %v1536
    %2109 = vmatprep.subr.bf16.mxu0 %v1531
    %2110 = vmatpush2.bf16.msra.mxu0 %v1530
    %2111 = vmatprep.mubr.bf16.mxu0 %v103
    %2112 = vmatmul.mubr.bf16.gmra.mxu0 %v102
    %v2113 = vpop.f32.mrf.mxu0
    %v2114 = vadd.f32 %v2071, %v2113
    %v2115 = vpop.f32.mrf.mxu0
    %v2116 = vadd.f32 %v2073, %v2115
    %v2117 = vpop.f32.mrf.mxu0
    %v2118 = vadd.f32 %v2075, %v2117
    %v2119 = vpop.f32.mrf.mxu0
    %v2120 = vadd.f32 %v2077, %v2119
    %2121 = vdwg.mxu0
    %2122 = vmatprep.subr.bf16.mxu0 %v1335
    %2123 = vmatpush1.bf16.msra.mxu0 %v1334
    %2124 = vmatprep.subr.bf16.mxu0 %v1329
    %2125 = vmatpush1.bf16.msra.mxu0 %v1328
    %2126 = vmatprep.subr.bf16.mxu0 %v1323
    %2127 = vmatpush1.bf16.msra.mxu0 %v1322
    %2128 = vmatprep.subr.bf16.mxu0 %v1317
    %2129 = vmatpush1.bf16.msra.mxu0 %v1316
    %2130 = vmatprep.subr.bf16.mxu0 %v1311
    %2131 = vmatpush1.bf16.msra.mxu0 %v1310
    %2132 = vmatprep.subr.bf16.mxu0 %v1305
    %2133 = vmatpush1.bf16.msra.mxu0 %v1304
    %2134 = vmatprep.subr.bf16.mxu0 %v1299
    %2135 = vmatpush1.bf16.msra.mxu0 %v1298
    %2136 = vmatprep.subr.bf16.mxu0 %v1293
    %2137 = vmatpush1.bf16.msra.mxu0 %v1292
    %2138 = vmatprep.subr.bf16.mxu0 %v1383
    %2139 = vmatpush2.bf16.msra.mxu0 %v1382
    %2140 = vmatprep.subr.bf16.mxu0 %v1377
    %2141 = vmatpush2.bf16.msra.mxu0 %v1376
    %2142 = vmatprep.subr.bf16.mxu0 %v1371
    %2143 = vmatpush2.bf16.msra.mxu0 %v1370
    %2144 = vmatprep.subr.bf16.mxu0 %v1365
    %2145 = vmatpush2.bf16.msra.mxu0 %v1364
    %2146 = vmatprep.subr.bf16.mxu0 %v1359
    %2147 = vmatpush2.bf16.msra.mxu0 %v1358
    %2148 = vmatprep.subr.bf16.mxu0 %v1353
    %2149 = vmatpush2.bf16.msra.mxu0 %v1352
    %2150 = vmatprep.subr.bf16.mxu0 %v1347
    %2151 = vmatpush2.bf16.msra.mxu0 %v1346
    %2152 = vmatprep.subr.bf16.mxu0 %v1341
    %2153 = vmatpush2.bf16.msra.mxu0 %v1340
    %2154 = vmatprep.mubr.bf16.mxu0 %v99
    %2155 = vmatmul.mubr.bf16.gmra.mxu0 %v98
    %v2156 = vpop.f32.mrf.mxu0
    %v2157 = vadd.f32 %v413, %v2156
    %v2158 = vpop.f32.mrf.mxu0
    %v2159 = vadd.f32 %v417, %v2158
    %v2160 = vpop.f32.mrf.mxu0
    %v2161 = vadd.f32 %v413, %v2160
    %v2162 = vpop.f32.mrf.mxu0
    %v2163 = vadd.f32 %v417, %v2162
    %2164 = vdwg.mxu0
    %2165 = vmatprep.subr.bf16.mxu0 %v1431
    %2166 = vmatpush1.bf16.msra.mxu0 %v1430
    %2167 = vmatprep.subr.bf16.mxu0 %v1425
    %2168 = vmatpush1.bf16.msra.mxu0 %v1424
    %2169 = vmatprep.subr.bf16.mxu0 %v1419
    %2170 = vmatpush1.bf16.msra.mxu0 %v1418
    %2171 = vmatprep.subr.bf16.mxu0 %v1413
    %2172 = vmatpush1.bf16.msra.mxu0 %v1412
    %2173 = vmatprep.subr.bf16.mxu0 %v1407
    %2174 = vmatpush1.bf16.msra.mxu0 %v1406
    %2175 = vmatprep.subr.bf16.mxu0 %v1401
    %2176 = vmatpush1.bf16.msra.mxu0 %v1400
    %2177 = vmatprep.subr.bf16.mxu0 %v1395
    %2178 = vmatpush1.bf16.msra.mxu0 %v1394
    %2179 = vmatprep.subr.bf16.mxu0 %v1389
    %2180 = vmatpush1.bf16.msra.mxu0 %v1388
    %2181 = vmatprep.subr.bf16.mxu0 %v1479
    %2182 = vmatpush2.bf16.msra.mxu0 %v1478
    %2183 = vmatprep.subr.bf16.mxu0 %v1473
    %2184 = vmatpush2.bf16.msra.mxu0 %v1472
    %2185 = vmatprep.subr.bf16.mxu0 %v1467
    %2186 = vmatpush2.bf16.msra.mxu0 %v1466
    %2187 = vmatprep.subr.bf16.mxu0 %v1461
    %2188 = vmatpush2.bf16.msra.mxu0 %v1460
    %2189 = vmatprep.subr.bf16.mxu0 %v1455
    %2190 = vmatpush2.bf16.msra.mxu0 %v1454
    %2191 = vmatprep.subr.bf16.mxu0 %v1449
    %2192 = vmatpush2.bf16.msra.mxu0 %v1448
    %2193 = vmatprep.subr.bf16.mxu0 %v1443
    %2194 = vmatpush2.bf16.msra.mxu0 %v1442
    %2195 = vmatprep.subr.bf16.mxu0 %v1437
    %2196 = vmatpush2.bf16.msra.mxu0 %v1436
    %2197 = vmatprep.mubr.bf16.mxu0 %v101
    %2198 = vmatmul.mubr.bf16.gmra.mxu0 %v100
    %v2199 = vpop.f32.mrf.mxu0
    %v2200 = vadd.f32 %v2157, %v2199
    %v2201 = vpop.f32.mrf.mxu0
    %v2202 = vadd.f32 %v2159, %v2201
    %v2203 = vpop.f32.mrf.mxu0
    %v2204 = vadd.f32 %v2161, %v2203
    %v2205 = vpop.f32.mrf.mxu0
    %v2206 = vadd.f32 %v2163, %v2205
    %2207 = vdwg.mxu0
    %2208 = vmatprep.subr.bf16.mxu0 %v1527
    %2209 = vmatpush1.bf16.msra.mxu0 %v1526
    %2210 = vmatprep.subr.bf16.mxu0 %v1521
    %2211 = vmatpush1.bf16.msra.mxu0 %v1520
    %2212 = vmatprep.subr.bf16.mxu0 %v1515
    %2213 = vmatpush1.bf16.msra.mxu0 %v1514
    %2214 = vmatprep.subr.bf16.mxu0 %v1509
    %2215 = vmatpush1.bf16.msra.mxu0 %v1508
    %2216 = vmatprep.subr.bf16.mxu0 %v1503
    %2217 = vmatpush1.bf16.msra.mxu0 %v1502
    %2218 = vmatprep.subr.bf16.mxu0 %v1497
    %2219 = vmatpush1.bf16.msra.mxu0 %v1496
    %2220 = vmatprep.subr.bf16.mxu0 %v1491
    %2221 = vmatpush1.bf16.msra.mxu0 %v1490
    %2222 = vmatprep.subr.bf16.mxu0 %v1485
    %2223 = vmatpush1.bf16.msra.mxu0 %v1484
    %2224 = vmatprep.subr.bf16.mxu0 %v1575
    %2225 = vmatpush2.bf16.msra.mxu0 %v1574
    %2226 = vmatprep.subr.bf16.mxu0 %v1569
    %2227 = vmatpush2.bf16.msra.mxu0 %v1568
    %2228 = vmatprep.subr.bf16.mxu0 %v1563
    %2229 = vmatpush2.bf16.msra.mxu0 %v1562
    %2230 = vmatprep.subr.bf16.mxu0 %v1557
    %2231 = vmatpush2.bf16.msra.mxu0 %v1556
    %2232 = vmatprep.subr.bf16.mxu0 %v1551
    %2233 = vmatpush2.bf16.msra.mxu0 %v1550
    %2234 = vmatprep.subr.bf16.mxu0 %v1545
    %2235 = vmatpush2.bf16.msra.mxu0 %v1544
    %2236 = vmatprep.subr.bf16.mxu0 %v1539
    %2237 = vmatpush2.bf16.msra.mxu0 %v1538
    %2238 = vmatprep.subr.bf16.mxu0 %v1533
    %2239 = vmatpush2.bf16.msra.mxu0 %v1532
    %2240 = vmatprep.mubr.bf16.mxu0 %v103
    %2241 = vmatmul.mubr.bf16.gmra.mxu0 %v102
    %v2242 = vpop.f32.mrf.mxu0
    %v2243 = vadd.f32 %v2200, %v2242
    %v2244 = vpop.f32.mrf.mxu0
    %v2245 = vadd.f32 %v2202, %v2244
    %v2246 = vpop.f32.mrf.mxu0
    %v2247 = vadd.f32 %v2204, %v2246
    %v2248 = vpop.f32.mrf.mxu0
    %v2249 = vadd.f32 %v2206, %v2248
    %2250 = vdwg.mxu0
    %v2251 = vpack.c.bf16 %v1989, %v1985
    %v2252 = vpack.c.bf16 %v1991, %v1987
    %v2253 = vpack.c.bf16 %v2118, %v2114
    %v2254 = vpack.c.bf16 %v2120, %v2116
    %v2255 = vpack.c.bf16 %v2247, %v2243
    %v2256 = vpack.c.bf16 %v2249, %v2245
    %v2257 = vmul.bf16 %v2251, 1056980736
    %v2258 = vmul.bf16 %v2252, 1056980736
    %v2259 = vmul.bf16 %v2253, 1056980736
    %v2260 = vmul.bf16 %v2254, 1056980736
    %v2261 = vmul.bf16 %v2255, 1056980736
    %v2262 = vmul.bf16 %v2256, 1056980736
    %v2263 = vmul.bf16 %v2251, 1060454197
    %v2264 = vmul.bf16 %v2252, 1060454197
    %v2265 = vmul.bf16 %v2253, 1060454197
    %v2266 = vmul.bf16 %v2254, 1060454197
    %v2267 = vmul.bf16 %v2255, 1060454197
    %v2268 = vmul.bf16 %v2256, 1060454197
    %v2269 = verf.bf16.pop %v2263
    %v2270 = verf.bf16.pop %v2264
    %v2271 = verf.bf16.pop %v2265
    %v2272 = verf.bf16.pop %v2266
    %v2273 = verf.bf16.pop %v2267
    %v2274 = verf.bf16.pop %v2268
    %v2275 = vadd.bf16 %v2269, 1065369472
    %v2276 = vadd.bf16 %v2270, 1065369472
    %v2277 = vadd.bf16 %v2271, 1065369472
    %v2278 = vadd.bf16 %v2272, 1065369472
    %v2279 = vadd.bf16 %v2273, 1065369472
    %v2280 = vadd.bf16 %v2274, 1065369472
    %v2281 = vmul.bf16 %v2257, %v2275
    %v2282 = vmul.bf16 %v2258, %v2276
    %v2283 = vmul.bf16 %v2259, %v2277
    %v2284 = vmul.bf16 %v2260, %v2278
    %v2285 = vmul.bf16 %v2261, %v2279
    %v2286 = vmul.bf16 %v2262, %v2280
    %v2287 = vunpack.c.l.bf16 %v2281
    %v2288 = vunpack.c.l.bf16 %v2282
    %v2289 = vunpack.c.l.bf16 %v2283
    %v2290 = vunpack.c.l.bf16 %v2284
    %v2291 = vunpack.c.l.bf16 %v2285
    %v2292 = vunpack.c.l.bf16 %v2286
    %v2293 = vunpack.c.h.bf16 %v2281
    %v2294 = vunpack.c.h.bf16 %v2282
    %v2295 = vunpack.c.h.bf16 %v2283
    %v2296 = vunpack.c.h.bf16 %v2284
    %v2297 = vunpack.c.h.bf16 %v2285
    %v2298 = vunpack.c.h.bf16 %v2286
    %v2299 = vadd.f32 %v2287, %v2288
    %v2300 = vadd.f32 %v2299, %v2289
    %v2301 = vadd.f32 %v2300, %v2290
    %v2302 = vadd.f32 %v2301, %v2291
    %v2303 = vadd.f32 %v2302, %v2292
    %2304 = vadd.xlane.f32.xlu0 %v2303
    %v2305 = vpop.xlane.xlu0 %2304
    %v2306 = vadd.f32 %v2293, %v2294
    %v2307 = vadd.f32 %v2306, %v2295
    %v2308 = vadd.f32 %v2307, %v2296
    %v2309 = vadd.f32 %v2308, %v2297
    %v2310 = vadd.f32 %v2309, %v2298
    %2311 = vadd.xlane.f32.xlu0 %v2310
    %v2312 = vpop.xlane.xlu0 %2311
    %v2313 = vrcp.pop 768.0
    %v2314 = vmul.f32 %v2305, %v2313
    %v2315 = vmul.f32 %v2312, %v2313
    %v2316 = vsub.f32 %v2287, %v2314
    %v2317 = vsub.f32 %v2288, %v2314
    %v2318 = vsub.f32 %v2289, %v2314
    %v2319 = vsub.f32 %v2290, %v2314
    %v2320 = vsub.f32 %v2291, %v2314
    %v2321 = vsub.f32 %v2292, %v2314
    %v2322 = vsub.f32 %v2293, %v2315
    %v2323 = vsub.f32 %v2294, %v2315
    %v2324 = vsub.f32 %v2295, %v2315
    %v2325 = vsub.f32 %v2296, %v2315
    %v2326 = vsub.f32 %v2297, %v2315
    %v2327 = vsub.f32 %v2298, %v2315
    %v2328 = vmul.f32 %v2316, %v2316
    %v2329 = vmul.f32 %v2317, %v2317
    %v2330 = vmul.f32 %v2318, %v2318
    %v2331 = vmul.f32 %v2319, %v2319
    %v2332 = vmul.f32 %v2320, %v2320
    %v2333 = vmul.f32 %v2321, %v2321
    %v2334 = vmul.f32 %v2322, %v2322
    %v2335 = vmul.f32 %v2323, %v2323
    %v2336 = vmul.f32 %v2324, %v2324
    %v2337 = vmul.f32 %v2325, %v2325
    %v2338 = vmul.f32 %v2326, %v2326
    %v2339 = vmul.f32 %v2327, %v2327
    %v2340 = vadd.f32 %v2328, %v2329
    %v2341 = vadd.f32 %v2340, %v2330
    %v2342 = vadd.f32 %v2341, %v2331
    %v2343 = vadd.f32 %v2342, %v2332
    %v2344 = vadd.f32 %v2343, %v2333
    %2345 = vadd.xlane.f32.xlu0 %v2344
    %v2346 = vpop.xlane.xlu0 %2345
    %v2347 = vadd.f32 %v2334, %v2335
    %v2348 = vadd.f32 %v2347, %v2336
    %v2349 = vadd.f32 %v2348, %v2337
    %v2350 = vadd.f32 %v2349, %v2338
    %v2351 = vadd.f32 %v2350, %v2339
    %2352 = vadd.xlane.f32.xlu0 %v2351
    %v2353 = vpop.xlane.xlu0 %2352
    %v2354 = vmul.f32 %v2346, %v2313
    %v2355 = vmul.f32 %v2353, %v2313
    %v2356 = vadd.f32 %v2354, 1e-12
    %v2357 = vadd.f32 %v2355, 1e-12
    %v2358 = vrsqrt.pop %v2356
    %v2359 = vrsqrt.pop %v2357
    %v2360 = vmul.f32 %v2316, %v2358
    %v2361 = vmul.f32 %v2317, %v2358
    %v2362 = vmul.f32 %v2318, %v2358
    %v2363 = vmul.f32 %v2319, %v2358
    %v2364 = vmul.f32 %v2320, %v2358
    %v2365 = vmul.f32 %v2321, %v2358
    %v2366 = vmul.f32 %v2322, %v2359
    %v2367 = vmul.f32 %v2323, %v2359
    %v2368 = vmul.f32 %v2324, %v2359
    %v2369 = vmul.f32 %v2325, %v2359
    %v2370 = vmul.f32 %v2326, %v2359
    %v2371 = vmul.f32 %v2327, %v2359
    %v2372 = vld [vmem:[#allocation8] sm:$0x3f]
    %v2374 = vlaneseq
    %v2375 = vshrl.u32 %v2374, 7
    %v2376 = vsub.s32 0, %v2375
    %v2377 = vrot.slane %v2372, %v2376
    %v2378 = vlaneseq
    %v2379 = vshrl.u32 %v2378, 7
    %v2380 = vsub.s32 1, %v2379
    %v2381 = vrot.slane %v2372, %v2380
    %v2382 = vlaneseq
    %v2383 = vshrl.u32 %v2382, 7
    %v2384 = vsub.s32 2, %v2383
    %v2385 = vrot.slane %v2372, %v2384
    %v2386 = vlaneseq
    %v2387 = vshrl.u32 %v2386, 7
    %v2388 = vsub.s32 3, %v2387
    %v2389 = vrot.slane %v2372, %v2388
    %v2390 = vlaneseq
    %v2391 = vshrl.u32 %v2390, 7
    %v2392 = vsub.s32 4, %v2391
    %v2393 = vrot.slane %v2372, %v2392
    %v2394 = vlaneseq
    %v2395 = vshrl.u32 %v2394, 7
    %v2396 = vsub.s32 5, %v2395
    %v2397 = vrot.slane %v2372, %v2396
    %v2404 = vmul.f32 %v2377, %v2360
    %v2405 = vmul.f32 %v2381, %v2361
    %v2406 = vmul.f32 %v2385, %v2362
    %v2407 = vmul.f32 %v2389, %v2363
    %v2408 = vmul.f32 %v2393, %v2364
    %v2409 = vmul.f32 %v2397, %v2365
    %v2410 = vmul.f32 %v2377, %v2366
    %v2411 = vmul.f32 %v2381, %v2367
    %v2412 = vmul.f32 %v2385, %v2368
    %v2413 = vmul.f32 %v2389, %v2369
    %v2414 = vmul.f32 %v2393, %v2370
    %v2415 = vmul.f32 %v2397, %v2371
    %v2416 = vld [vmem:[#allocation10] sm:$0x3f]
    %v2418 = vlaneseq
    %v2419 = vshrl.u32 %v2418, 7
    %v2420 = vsub.s32 0, %v2419
    %v2421 = vrot.slane %v2416, %v2420
    %v2422 = vlaneseq
    %v2423 = vshrl.u32 %v2422, 7
    %v2424 = vsub.s32 1, %v2423
    %v2425 = vrot.slane %v2416, %v2424
    %v2426 = vlaneseq
    %v2427 = vshrl.u32 %v2426, 7
    %v2428 = vsub.s32 2, %v2427
    %v2429 = vrot.slane %v2416, %v2428
    %v2430 = vlaneseq
    %v2431 = vshrl.u32 %v2430, 7
    %v2432 = vsub.s32 3, %v2431
    %v2433 = vrot.slane %v2416, %v2432
    %v2434 = vlaneseq
    %v2435 = vshrl.u32 %v2434, 7
    %v2436 = vsub.s32 4, %v2435
    %v2437 = vrot.slane %v2416, %v2436
    %v2438 = vlaneseq
    %v2439 = vshrl.u32 %v2438, 7
    %v2440 = vsub.s32 5, %v2439
    %v2441 = vrot.slane %v2416, %v2440
    %v2448 = vadd.f32 %v2404, %v2421
    %v2449 = vadd.f32 %v2405, %v2425
    %v2450 = vadd.f32 %v2406, %v2429
    %v2451 = vadd.f32 %v2407, %v2433
    %v2452 = vadd.f32 %v2408, %v2437
    %v2453 = vadd.f32 %v2409, %v2441
    %v2454 = vadd.f32 %v2410, %v2421
    %v2455 = vadd.f32 %v2411, %v2425
    %v2456 = vadd.f32 %v2412, %v2429
    %v2457 = vadd.f32 %v2413, %v2433
    %v2458 = vadd.f32 %v2414, %v2437
    %v2459 = vadd.f32 %v2415, %v2441
    %2460 = vst [vmem:[#allocation11] sm:$0xff] %v2448
    %2461 = vst [vmem:[#allocation11 + $0x8] sm:$0xff] %v2449
    %2462 = vst [vmem:[#allocation11 + $0x10] sm:$0xff] %v2450
    %2463 = vst [vmem:[#allocation11 + $0x18] sm:$0xff] %v2451
    %2464 = vst [vmem:[#allocation11 + $0x20] sm:$0xff] %v2452
    %2465 = vst [vmem:[#allocation11 + $0x28] sm:$0xff] %v2453
    %2466 = vst [vmem:[#allocation11 + $0x30] sm:$0xff] %v2454
    %2467 = vst [vmem:[#allocation11 + $0x38] sm:$0xff] %v2455
    %2468 = vst [vmem:[#allocation11 + $0x40] sm:$0xff] %v2456
    %2469 = vst [vmem:[#allocation11 + $0x48] sm:$0xff] %v2457
    %2470 = vst [vmem:[#allocation11 + $0x50] sm:$0xff] %v2458
    %2471 = vst [vmem:[#allocation11 + $0x58] sm:$0xff] %v2459
    // Predicated region
    $region42: #{bert_prediction_head_transform.1} parent=1 // pred_check
      _
    $region43: #{bert_prediction_head_transform.1} parent=1 // pred_check_branch
      %2473 = sbr.rel (0) target = $region45
    $region44: #{bert_prediction_head_transform.1} parent=1 // pred_region
      %s2475 = ssub.s32 1536, 1536
      %2476 = vsyncadd [#allocation4], %s2475
      %s2477 = sshll.u32 [#allocation11], 4
      %s2478 = int_to_ptr.vmem [resolvable:$true] %s2477
      %2483 = dma.vmem_to_hbm [thread:$0]  %s2478, 1536, %s5, [#allocation4], 768, 768, 48
    $region45: #{bert_prediction_head_transform.1} parent=1 // pred_fallthru
      _
    // Predicated region
    $region46: #{bert_prediction_head_transform.1} parent=1 // pred_check
      _
    $region47: #{bert_prediction_head_transform.1} parent=1 // pred_check_branch
      %2485 = sbr.rel (0) target = $region49
    $region48: #{bert_prediction_head_transform.1} parent=1 // pred_region
      %2486 = dma.done [#allocation4], 1536
    $region49: #{bert_prediction_head_transform.1} parent=1 // pred_fallthru
      _
    %2487 = vsyncpa [#allocation3], 1
    %2488 = vsyncpa [#allocation6], 1
    %2489 = vsyncpa [#allocation9], 1
    %2490 = vsyncpa [#allocation4], 1

</llo_original>
